<compile_context>
chip_gen: v7x
topology: tpu7x:2x2x1
jax: 0.10.0
libtpu: 0.0.40
codegen_flags: <defaults>
</compile_context>

<pallas_src>
import jax
import jax.numpy as jnp
from jax.experimental import pallas as pl
from jax.experimental.pallas import tpu as pltpu

# ----------------------- small BERT-like configuration -----------------------
VOCAB = 128
HIDDEN = 32
NUM_HEADS = 4
HEAD_DIM = HIDDEN // NUM_HEADS
INTERMEDIATE = 64
NUM_LAYERS = 2
MAX_POS = 16
TYPE_VOCAB = 2
LN_EPS = 1e-12          # BERT LayerNorm eps


# ------------------------------ fused kernel ----------------------------------
def _make_encoder_kernel(Bg, S):
    """Kernel closure over static per-step batch (Bg) and sequence (S) sizes."""
    Rg = Bg * S  # rows per grid step: batch folded onto the sublane axis

    def kernel(emb_ref, maskf_ref, maskc_ref,
               emb_ln_g_ref, emb_ln_b_ref,
               wqkv_ref, bqkv_ref, wo_ref, bo_ref,
               ln1_g_ref, ln1_b_ref,
               w1_ref, b1_ref, w2_ref, b2_ref,
               ln2_g_ref, ln2_b_ref,
               out_ref):
        f32, bf16 = jnp.float32, jnp.bfloat16

        def layer_norm(x, g, b):
            mu = jnp.mean(x, axis=-1, keepdims=True)
            d = x - mu
            var = jnp.mean(d * d, axis=-1, keepdims=True)
            return d * jax.lax.rsqrt(var + LN_EPS) * g + b

        def split_heads(x, off):
            # (rows, 3H) slab -> (NUM_HEADS, rows, HEAD_DIM); leading-axis stack.
            return jnp.stack(
                [x[:, off + i * HEAD_DIM: off + (i + 1) * HEAD_DIM]
                 for i in range(NUM_HEADS)], axis=0)

        h = layer_norm(emb_ref[0], emb_ln_g_ref[...], emb_ln_b_ref[...])   # (Rg, H)

        # Hoisted mask broadcasts: built ONCE, reused by every layer / head.
        mask_full = jnp.broadcast_to(maskf_ref[...], (NUM_HEADS, Rg, Rg))
        mask_cls = jnp.broadcast_to(maskc_ref[...], (NUM_HEADS, Bg, Rg))

        # Static unroll over layers: full LLO scheduling visibility.
        for l in range(NUM_LAYERS):
            last = l == NUM_LAYERS - 1
            # Fused QKV projection (1/sqrt(Dh) folded into Wq/bq at pack time).
            # bf16 MXU operands, f32 accumulation.
            qkv = jnp.dot(h.astype(bf16), wqkv_ref[l],
                          preferred_element_type=f32) + bqkv_ref[l]        # (Rg, 3H)
            qkv_b = qkv.astype(bf16)
            if last:
                # Only the CLS rows of the final layer are emitted -> restrict
                # the query side and everything downstream to those rows.
                q_src = qkv.reshape(Bg, S, 3 * HIDDEN)[:, 0, :].astype(bf16)  # (Bg,3H)
                h_res = h.reshape(Bg, S, HIDDEN)[:, 0, :]                     # (Bg, H)
                mask = mask_cls
            else:
                q_src, h_res, mask = qkv_b, h, mask_full

            qh = split_heads(q_src, 0)                   # (heads, rows_q, Dh)
            kh = split_heads(qkv_b, HIDDEN)              # (heads, Rg,     Dh)
            vh = split_heads(qkv_b, 2 * HIDDEN)          # (heads, Rg,     Dh)

            # All heads batched through one scores matmul and ONE softmax.
            scores = jnp.einsum("hqd,hkd->hqk", qh, kh,
                                preferred_element_type=f32) + mask
            mx = jnp.max(scores, axis=-1, keepdims=True)
            p = jnp.exp(scores - mx)
            denom = jnp.sum(p, axis=-1, keepdims=True)
            p = p * pl.reciprocal(denom, approx=True)    # EUP divide

            ctx = jnp.einsum("hqk,hkd->hqd", p.astype(bf16), vh,
                             preferred_element_type=f32)        # (heads, rows_q, Dh)
            # Head-batched output projection + reduce over heads: no lane concat.
            attn = jnp.einsum("hqd,hdo->hqo", ctx.astype(bf16), wo_ref[l],
                              preferred_element_type=f32)
            attn = jnp.sum(attn, axis=0) + bo_ref[l]             # (rows_q, H)
            h = layer_norm(attn + h_res, ln1_g_ref[l], ln1_b_ref[l])

            ff = jnp.dot(h.astype(bf16), w1_ref[l],
                         preferred_element_type=f32) + b1_ref[l]
            # TODO(synk): HF BERT uses exact erf-GELU; tanh-approx GELU used here.
            ff = jax.nn.gelu(ff, approximate=True)
            ff = jnp.dot(ff.astype(bf16), w2_ref[l],
                         preferred_element_type=f32) + b2_ref[l]
            h = layer_norm(ff + h, ln2_g_ref[l], ln2_b_ref[l])

        # last_hidden_state[:, 0]: CLS rows, single lane-dense writeback.
        out_ref[0] = h                                           # (Bg, HIDDEN)

    return kernel


# ------------------------------- pallas wrapper --------------------------------
def encoder_only_forward(packed, input_ids, attention_mask, groups=1):
    """Equivalent of EncoderOnly.forward: returns last_hidden_state[:, 0].

    `groups` = number of grid steps the batch is split into.  Default 1 folds
    the whole batch into the sublane axis of a single step (best on v5e/v6e,
    where the grid is a serial loop); set groups=2 on v7x so both TensorCores
    get work.
    """
    B, S = input_ids.shape
    assert B % groups == 0
    Bg = B // groups
    Rg = Bg * S
    L = NUM_LAYERS

    # Embedding gathers are plain-JAX glue (token-id gather, not a hot matmul).
    emb = (jnp.take(packed["word_emb"], input_ids, axis=0)
           + packed["pos_emb"][None, :S, :]
           + packed["type_emb"][0][None, None, :])                        # (B, S, H)
    emb = emb.reshape(groups, Rg, HIDDEN)

    # Block-diagonal additive mask: batch elements folded onto the sublane axis
    # must not attend across each other; padded key positions get -1e9.
    am = attention_mask.astype(jnp.float32).reshape(groups, Bg, S)
    eye = jnp.eye(Bg, dtype=jnp.float32)
    attend = eye[None, :, None, :, None] * am[:, None, None, :, :]        # (G,Bg,1,Bg,S)
    attend = jnp.broadcast_to(attend, (groups, Bg, S, Bg, S))
    mask_full = ((1.0 - attend) * -1e9).reshape(groups, Rg, Rg)           # (G,Rg,Rg)
    mask_cls = mask_full.reshape(groups, Bg, S, Rg)[:, :, 0, :]           # (G,Bg,Rg)

    def full(shape):
        # Weight blocks: full array, constant block index -> DMA'd once, resident.
        return pl.BlockSpec(shape, lambda g, _n=len(shape): (0,) * _n)

    out = pl.pallas_call(
        _make_encoder_kernel(Bg, S),
        out_shape=jax.ShapeDtypeStruct((groups, Bg, HIDDEN), jnp.float32),
        grid=(groups,),
        in_specs=[
            pl.BlockSpec((1, Rg, HIDDEN), lambda g: (g, 0, 0)),           # embeddings
            pl.BlockSpec((1, Rg, Rg), lambda g: (g, 0, 0)),               # full mask
            pl.BlockSpec((1, Bg, Rg), lambda g: (g, 0, 0)),               # CLS-row mask
            full((1, HIDDEN)), full((1, HIDDEN)),                         # emb LN
            full((L, HIDDEN, 3 * HIDDEN)), full((L, 1, 3 * HIDDEN)),      # fused QKV
            full((L, NUM_HEADS, HEAD_DIM, HIDDEN)), full((L, 1, HIDDEN)), # attn out proj
            full((L, 1, HIDDEN)), full((L, 1, HIDDEN)),                   # attn LN
            full((L, HIDDEN, INTERMEDIATE)), full((L, 1, INTERMEDIATE)),  # FFN in
            full((L, INTERMEDIATE, HIDDEN)), full((L, 1, HIDDEN)),        # FFN out
            full((L, 1, HIDDEN)), full((L, 1, HIDDEN)),                   # FFN LN
        ],
        out_specs=pl.BlockSpec((1, Bg, HIDDEN), lambda g: (g, 0, 0)),
        compiler_params=pltpu.CompilerParams(dimension_semantics=("parallel",)),
    )(emb, mask_full, mask_cls,
      packed["emb_ln_g"], packed["emb_ln_b"],
      packed["wqkv"], packed["bqkv"],
      packed["wo"], packed["bo"],
      packed["ln1_g"], packed["ln1_b"],
      packed["w1"], packed["b1"],
      packed["w2"], packed["b2"],
      packed["ln2_g"], packed["ln2_b"])
    return out.reshape(B, HIDDEN)                                         # (B, HIDDEN)


# ------------------------------ parameter setup -------------------------------
def init_params(key):
    def dense(k, fan_in, fan_out):
        k1, k2 = jax.random.split(k)
        w = 0.02 * jax.random.normal(k1, (fan_in, fan_out), jnp.float32)
        b = 0.02 * jax.random.normal(k2, (fan_out,), jnp.float32)
        return w, b

    keys = jax.random.split(key, 3 + NUM_LAYERS)
    params = {
        "word_emb": 0.02 * jax.random.normal(keys[0], (VOCAB, HIDDEN), jnp.float32),
        "pos_emb": 0.02 * jax.random.normal(keys[1], (MAX_POS, HIDDEN), jnp.float32),
        "type_emb": 0.02 * jax.random.normal(keys[2], (TYPE_VOCAB, HIDDEN), jnp.float32),
        "emb_ln_g": jnp.ones((HIDDEN,), jnp.float32),
        "emb_ln_b": jnp.zeros((HIDDEN,), jnp.float32),
        "layers": [],
    }
    for l in range(NUM_LAYERS):
        lk = jax.random.split(keys[3 + l], 6)
        params["layers"].append({
            "q": dense(lk[0], HIDDEN, HIDDEN),
            "k": dense(lk[1], HIDDEN, HIDDEN),
            "v": dense(lk[2], HIDDEN, HIDDEN),
            "attn_out": dense(lk[3], HIDDEN, HIDDEN),
            "attn_ln_g": jnp.ones((HIDDEN,), jnp.float32),
            "attn_ln_b": jnp.zeros((HIDDEN,), jnp.float32),
            "ffn_in": dense(lk[4], HIDDEN, INTERMEDIATE),
            "ffn_out": dense(lk[5], INTERMEDIATE, HIDDEN),
            "ffn_ln_g": jnp.ones((HIDDEN,), jnp.float32),
            "ffn_ln_b": jnp.zeros((HIDDEN,), jnp.float32),
        })
    return params


def pack_params(params):
    """Stack per-layer weights, fuse QKV, fold 1/sqrt(Dh), bf16 matmul weights."""
    scale = 1.0 / (HEAD_DIM ** 0.5)
    wqkv, bqkv, wo, bo = [], [], [], []
    ln1_g, ln1_b, w1, b1, w2, b2, ln2_g, ln2_b = [], [], [], [], [], [], [], []
    for lyr in params["layers"]:
        wq, bq = lyr["q"]; wk, bk = lyr["k"]; wv, bv = lyr["v"]
        # Fold 1/sqrt(Dh) attention scale into Wq/bq: (x@Wq+bq)*s == x@(Wq*s)+(bq*s)
        wqkv.append(jnp.concatenate([wq * scale, wk, wv], axis=1).astype(jnp.bfloat16))
        bqkv.append(jnp.concatenate([bq * scale, bk, bv], axis=0)[None, :])
        wao, bao = lyr["attn_out"]
        # Output projection pre-split by head: (NUM_HEADS, HEAD_DIM, HIDDEN).
        wo.append(wao.astype(jnp.bfloat16).reshape(NUM_HEADS, HEAD_DIM, HIDDEN))
        bo.append(bao[None, :])
        ln1_g.append(lyr["attn_ln_g"][None, :]); ln1_b.append(lyr["attn_ln_b"][None, :])
        wf1, bf1 = lyr["ffn_in"]
        w1.append(wf1.astype(jnp.bfloat16)); b1.append(bf1[None, :])
        wf2, bf2 = lyr["ffn_out"]
        w2.append(wf2.astype(jnp.bfloat16)); b2.append(bf2[None, :])
        ln2_g.append(lyr["ffn_ln_g"][None, :]); ln2_b.append(lyr["ffn_ln_b"][None, :])

    stack = lambda xs: jnp.stack(xs, axis=0)
    return {
        "word_emb": params["word_emb"],
        "pos_emb": params["pos_emb"],
        "type_emb": params["type_emb"],
        "emb_ln_g": params["emb_ln_g"].reshape(1, HIDDEN),
        "emb_ln_b": params["emb_ln_b"].reshape(1, HIDDEN),
        "wqkv": stack(wqkv), "bqkv": stack(bqkv),
        "wo": stack(wo), "bo": stack(bo),
        "ln1_g": stack(ln1_g), "ln1_b": stack(ln1_b),
        "w1": stack(w1), "b1": stack(b1),
        "w2": stack(w2), "b2": stack(b2),
        "ln2_g": stack(ln2_g), "ln2_b": stack(ln2_b),
    }


# ----------------------------- pure-JAX reference ------------------------------
def _reference_forward(packed, input_ids, attention_mask):
    B, S = input_ids.shape
    h = (jnp.take(packed["word_emb"], input_ids, axis=0)
         + packed["pos_emb"][None, :S, :]
         + packed["type_emb"][0][None, None, :])
    add_mask = ((1.0 - attention_mask.astype(jnp.float32)) * -1e9).reshape(B, 1, 1, S)

    def ln(x, g, b):
        mu = jnp.mean(x, axis=-1, keepdims=True)
        d = x - mu
        var = jnp.mean(d * d, axis=-1, keepdims=True)
        return d * jax.lax.rsqrt(var + LN_EPS) * g + b

    h = ln(h, packed["emb_ln_g"][0], packed["emb_ln_b"][0])
    for l in range(NUM_LAYERS):
        qkv = h @ packed["wqkv"][l].astype(jnp.float32) + packed["bqkv"][l][0]
        q, k, v = jnp.split(qkv, 3, axis=-1)
        sh = lambda x: x.reshape(B, S, NUM_HEADS, HEAD_DIM).transpose(0, 2, 1, 3)
        q, k, v = sh(q), sh(k), sh(v)
        scores = jnp.einsum("bhqd,bhkd->bhqk", q, k) + add_mask
        p = jax.nn.softmax(scores, axis=-1)
        ctx = jnp.einsum("bhqk,bhkd->bhqd", p, v).transpose(0, 2, 1, 3).reshape(B, S, HIDDEN)
        wo = packed["wo"][l].astype(jnp.float32).reshape(HIDDEN, HIDDEN)
        attn_out = ctx @ wo + packed["bo"][l][0]
        h = ln(attn_out + h, packed["ln1_g"][l][0], packed["ln1_b"][l][0])
        ff = jax.nn.gelu(h @ packed["w1"][l].astype(jnp.float32) + packed["b1"][l][0],
                         approximate=True)
        ff_out = ff @ packed["w2"][l].astype(jnp.float32) + packed["b2"][l][0]
        h = ln(ff_out + h, packed["ln2_g"][l][0], packed["ln2_b"][l][0])
    return h[:, 0]


# ----------------------------------- main --------------------------------------
if __name__ == "__main__":
    key = jax.random.PRNGKey(0)
    pkey, ikey = jax.random.split(key)
    params = init_params(pkey)
    packed = pack_params(params)

    B, S = 2, 8
    input_ids = jax.random.randint(ikey, (B, S), 0, VOCAB, dtype=jnp.int32)
    attention_mask = jnp.array([[1, 1, 1, 1, 1, 1, 1, 1],
                                [1, 1, 1, 1, 1, 1, 0, 0]], dtype=jnp.int32)

    cls = jax.jit(encoder_only_forward)(packed, input_ids, attention_mask)
    cls = jax.block_until_ready(cls)
    assert cls.shape == (B, HIDDEN) and cls.dtype == jnp.float32

    ref = jax.jit(_reference_forward)(packed, input_ids, attention_mask)
    ref = jax.block_until_ready(ref)
    assert jnp.allclose(cls, ref, rtol=2e-2, atol=2e-2), "mismatch vs pure-JAX reference"

    print("KERNEL_OK")
</pallas_src>

<mosaic_0001>
module attributes {stable_mosaic.version = 11 : i64} {
  func.func @kernel(%arg0: i32, %arg1: memref<1x16x32xf32, #tpu.memory_space<vmem>>, %arg2: memref<1x16x16xf32, #tpu.memory_space<vmem>>, %arg3: memref<1x2x16xf32, #tpu.memory_space<vmem>>, %arg4: memref<1x32xf32, #tpu.memory_space<vmem>>, %arg5: memref<1x32xf32, #tpu.memory_space<vmem>>, %arg6: memref<2x32x96xbf16, #tpu.memory_space<vmem>>, %arg7: memref<2x1x96xf32, #tpu.memory_space<vmem>>, %arg8: memref<2x4x8x32xbf16, #tpu.memory_space<vmem>>, %arg9: memref<2x1x32xf32, #tpu.memory_space<vmem>>, %arg10: memref<2x1x32xf32, #tpu.memory_space<vmem>>, %arg11: memref<2x1x32xf32, #tpu.memory_space<vmem>>, %arg12: memref<2x32x64xbf16, #tpu.memory_space<vmem>>, %arg13: memref<2x1x64xf32, #tpu.memory_space<vmem>>, %arg14: memref<2x64x32xbf16, #tpu.memory_space<vmem>>, %arg15: memref<2x1x32xf32, #tpu.memory_space<vmem>>, %arg16: memref<2x1x32xf32, #tpu.memory_space<vmem>>, %arg17: memref<2x1x32xf32, #tpu.memory_space<vmem>>, %arg18: memref<1x2x32xf32, #tpu.memory_space<vmem>>) attributes {dimension_semantics = [#tpu.dimension_semantics<parallel>], iteration_bounds = array<i64: 1>, scalar_prefetch = 0 : i64, scratch_operands = 0 : i64, tpu.core_type = #tpu.core_type<tc>, window_params = [{transform_indices = @transform_0, window_bounds = array<i64: 1, 16, 32>}, {transform_indices = @transform_1, window_bounds = array<i64: 1, 16, 16>}, {transform_indices = @transform_2, window_bounds = array<i64: 1, 2, 16>}, {pipeline_mode = #tpu.pipeline_mode<synchronous>, transform_indices = @transform_3, window_bounds = array<i64: 1, 32>}, {pipeline_mode = #tpu.pipeline_mode<synchronous>, transform_indices = @transform_4, window_bounds = array<i64: 1, 32>}, {pipeline_mode = #tpu.pipeline_mode<synchronous>, transform_indices = @transform_5, window_bounds = array<i64: 2, 32, 96>}, {pipeline_mode = #tpu.pipeline_mode<synchronous>, transform_indices = @transform_6, window_bounds = array<i64: 2, 1, 96>}, {pipeline_mode = #tpu.pipeline_mode<synchronous>, transform_indices = @transform_7, window_bounds = array<i64: 2, 4, 8, 32>}, {pipeline_mode = #tpu.pipeline_mode<synchronous>, transform_indices = @transform_8, window_bounds = array<i64: 2, 1, 32>}, {pipeline_mode = #tpu.pipeline_mode<synchronous>, transform_indices = @transform_9, window_bounds = array<i64: 2, 1, 32>}, {pipeline_mode = #tpu.pipeline_mode<synchronous>, transform_indices = @transform_10, window_bounds = array<i64: 2, 1, 32>}, {pipeline_mode = #tpu.pipeline_mode<synchronous>, transform_indices = @transform_11, window_bounds = array<i64: 2, 32, 64>}, {pipeline_mode = #tpu.pipeline_mode<synchronous>, transform_indices = @transform_12, window_bounds = array<i64: 2, 1, 64>}, {pipeline_mode = #tpu.pipeline_mode<synchronous>, transform_indices = @transform_13, window_bounds = array<i64: 2, 64, 32>}, {pipeline_mode = #tpu.pipeline_mode<synchronous>, transform_indices = @transform_14, window_bounds = array<i64: 2, 1, 32>}, {pipeline_mode = #tpu.pipeline_mode<synchronous>, transform_indices = @transform_15, window_bounds = array<i64: 2, 1, 32>}, {pipeline_mode = #tpu.pipeline_mode<synchronous>, transform_indices = @transform_16, window_bounds = array<i64: 2, 1, 32>}, {transform_indices = @transform_17, window_bounds = array<i64: 1, 2, 32>}]} {
    %c0 = arith.constant 0 : index
    %c0_0 = arith.constant 0 : index
    %c0_1 = arith.constant 0 : index
    %0 = vector.load %arg1[%c0, %c0_0, %c0_1] : memref<1x16x32xf32, #tpu.memory_space<vmem>>, vector<1x16x32xf32>
    %1 = vector.shape_cast %0 : vector<1x16x32xf32> to vector<16x32xf32>
    %c0_2 = arith.constant 0 : index
    %c0_3 = arith.constant 0 : index
    %2 = vector.load %arg4[%c0_2, %c0_3] : memref<1x32xf32, #tpu.memory_space<vmem>>, vector<1x32xf32>
    %c0_4 = arith.constant 0 : index
    %c0_5 = arith.constant 0 : index
    %3 = vector.load %arg5[%c0_4, %c0_5] : memref<1x32xf32, #tpu.memory_space<vmem>>, vector<1x32xf32>
    %cst = arith.constant dense<0.000000e+00> : vector<16xf32>
    %4 = vector.multi_reduction <add>, %1, %cst [1] : vector<16x32xf32> to vector<16xf32>
    %5 = vector.shape_cast %4 : vector<16xf32> to vector<16x1xf32>
    %cst_6 = arith.constant 3.200000e+01 : f32
    %6 = vector.broadcast %cst_6 : f32 to vector<16x1xf32>
    %7 = arith.divf %5, %6 : vector<16x1xf32>
    %8 = vector.broadcast %7 : vector<16x1xf32> to vector<16x32xf32>
    %9 = arith.subf %1, %8 : vector<16x32xf32>
    %10 = arith.mulf %9, %9 : vector<16x32xf32>
    %cst_7 = arith.constant dense<0.000000e+00> : vector<16xf32>
    %11 = vector.multi_reduction <add>, %10, %cst_7 [1] : vector<16x32xf32> to vector<16xf32>
    %12 = vector.shape_cast %11 : vector<16xf32> to vector<16x1xf32>
    %cst_8 = arith.constant 3.200000e+01 : f32
    %13 = vector.broadcast %cst_8 : f32 to vector<16x1xf32>
    %14 = arith.divf %12, %13 : vector<16x1xf32>
    %cst_9 = arith.constant 9.99999996E-13 : f32
    %15 = vector.broadcast %cst_9 : f32 to vector<16x1xf32>
    %16 = arith.addf %14, %15 : vector<16x1xf32>
    %17 = math.rsqrt %16 : vector<16x1xf32>
    %18 = vector.broadcast %17 : vector<16x1xf32> to vector<16x32xf32>
    %19 = arith.mulf %9, %18 : vector<16x32xf32>
    %20 = vector.broadcast %2 : vector<1x32xf32> to vector<16x32xf32>
    %21 = arith.mulf %19, %20 : vector<16x32xf32>
    %22 = vector.broadcast %3 : vector<1x32xf32> to vector<16x32xf32>
    %23 = arith.addf %21, %22 : vector<16x32xf32>
    %c0_10 = arith.constant 0 : index
    %c0_11 = arith.constant 0 : index
    %c0_12 = arith.constant 0 : index
    %24 = vector.load %arg2[%c0_10, %c0_11, %c0_12] : memref<1x16x16xf32, #tpu.memory_space<vmem>>, vector<1x16x16xf32>
    %25 = vector.shape_cast %24 : vector<1x16x16xf32> to vector<1x16x16xf32>
    %26 = vector.broadcast %25 : vector<1x16x16xf32> to vector<4x16x16xf32>
    %c0_13 = arith.constant 0 : index
    %c0_14 = arith.constant 0 : index
    %c0_15 = arith.constant 0 : index
    %27 = vector.load %arg3[%c0_13, %c0_14, %c0_15] : memref<1x2x16xf32, #tpu.memory_space<vmem>>, vector<1x2x16xf32>
    %28 = vector.shape_cast %27 : vector<1x2x16xf32> to vector<1x2x16xf32>
    %29 = vector.broadcast %28 : vector<1x2x16xf32> to vector<4x2x16xf32>
    %30 = arith.truncf %23 : vector<16x32xf32> to vector<16x32xbf16>
    %c0_16 = arith.constant 0 : index
    %c0_17 = arith.constant 0 : index
    %c0_18 = arith.constant 0 : index
    %31 = vector.load %arg6[%c0_16, %c0_17, %c0_18] : memref<2x32x96xbf16, #tpu.memory_space<vmem>>, vector<1x32x96xbf16>
    %32 = vector.shape_cast %31 : vector<1x32x96xbf16> to vector<32x96xbf16>
    %cst_19 = arith.constant dense<0.000000e+00> : vector<16x96xf32>
    %33 = tpu.matmul %30, %32, %cst_19 {dimension_numbers = #tpu.dot_dimension_numbers<[1], [0], [0], [1], [0, 0, 1, 1], [], []>} : vector<16x32xbf16>, vector<32x96xbf16>, vector<16x96xf32> -> vector<16x96xf32>
    %c0_20 = arith.constant 0 : index
    %c0_21 = arith.constant 0 : index
    %c0_22 = arith.constant 0 : index
    %34 = vector.load %arg7[%c0_20, %c0_21, %c0_22] : memref<2x1x96xf32, #tpu.memory_space<vmem>>, vector<1x1x96xf32>
    %35 = vector.shape_cast %34 : vector<1x1x96xf32> to vector<1x96xf32>
    %36 = vector.broadcast %35 : vector<1x96xf32> to vector<16x96xf32>
    %37 = arith.addf %33, %36 : vector<16x96xf32>
    %38 = arith.truncf %37 : vector<16x96xf32> to vector<16x96xbf16>
    %39 = vector.extract_strided_slice %38 {offsets = [0, 0], sizes = [16, 8], strides = [1, 1]} : vector<16x96xbf16> to vector<16x8xbf16>
    %40 = vector.extract_strided_slice %38 {offsets = [0, 8], sizes = [16, 8], strides = [1, 1]} : vector<16x96xbf16> to vector<16x8xbf16>
    %41 = vector.extract_strided_slice %38 {offsets = [0, 16], sizes = [16, 8], strides = [1, 1]} : vector<16x96xbf16> to vector<16x8xbf16>
    %42 = vector.extract_strided_slice %38 {offsets = [0, 24], sizes = [16, 8], strides = [1, 1]} : vector<16x96xbf16> to vector<16x8xbf16>
    %43 = vector.shape_cast %39 : vector<16x8xbf16> to vector<1x16x8xbf16>
    %44 = vector.shape_cast %40 : vector<16x8xbf16> to vector<1x16x8xbf16>
    %45 = vector.shape_cast %41 : vector<16x8xbf16> to vector<1x16x8xbf16>
    %46 = vector.shape_cast %42 : vector<16x8xbf16> to vector<1x16x8xbf16>
    %47 = tpu.concatenate %43, %44, %45, %46 in 0 : vector<1x16x8xbf16>, vector<1x16x8xbf16>, vector<1x16x8xbf16>, vector<1x16x8xbf16> -> vector<4x16x8xbf16>
    %48 = vector.extract_strided_slice %38 {offsets = [0, 32], sizes = [16, 8], strides = [1, 1]} : vector<16x96xbf16> to vector<16x8xbf16>
    %49 = vector.extract_strided_slice %38 {offsets = [0, 40], sizes = [16, 8], strides = [1, 1]} : vector<16x96xbf16> to vector<16x8xbf16>
    %50 = vector.extract_strided_slice %38 {offsets = [0, 48], sizes = [16, 8], strides = [1, 1]} : vector<16x96xbf16> to vector<16x8xbf16>
    %51 = vector.extract_strided_slice %38 {offsets = [0, 56], sizes = [16, 8], strides = [1, 1]} : vector<16x96xbf16> to vector<16x8xbf16>
    %52 = vector.shape_cast %48 : vector<16x8xbf16> to vector<1x16x8xbf16>
    %53 = vector.shape_cast %49 : vector<16x8xbf16> to vector<1x16x8xbf16>
    %54 = vector.shape_cast %50 : vector<16x8xbf16> to vector<1x16x8xbf16>
    %55 = vector.shape_cast %51 : vector<16x8xbf16> to vector<1x16x8xbf16>
    %56 = tpu.concatenate %52, %53, %54, %55 in 0 : vector<1x16x8xbf16>, vector<1x16x8xbf16>, vector<1x16x8xbf16>, vector<1x16x8xbf16> -> vector<4x16x8xbf16>
    %57 = vector.extract_strided_slice %38 {offsets = [0, 64], sizes = [16, 8], strides = [1, 1]} : vector<16x96xbf16> to vector<16x8xbf16>
    %58 = vector.extract_strided_slice %38 {offsets = [0, 72], sizes = [16, 8], strides = [1, 1]} : vector<16x96xbf16> to vector<16x8xbf16>
    %59 = vector.extract_strided_slice %38 {offsets = [0, 80], sizes = [16, 8], strides = [1, 1]} : vector<16x96xbf16> to vector<16x8xbf16>
    %60 = vector.extract_strided_slice %38 {offsets = [0, 88], sizes = [16, 8], strides = [1, 1]} : vector<16x96xbf16> to vector<16x8xbf16>
    %61 = vector.shape_cast %57 : vector<16x8xbf16> to vector<1x16x8xbf16>
    %62 = vector.shape_cast %58 : vector<16x8xbf16> to vector<1x16x8xbf16>
    %63 = vector.shape_cast %59 : vector<16x8xbf16> to vector<1x16x8xbf16>
    %64 = vector.shape_cast %60 : vector<16x8xbf16> to vector<1x16x8xbf16>
    %65 = tpu.concatenate %61, %62, %63, %64 in 0 : vector<1x16x8xbf16>, vector<1x16x8xbf16>, vector<1x16x8xbf16>, vector<1x16x8xbf16> -> vector<4x16x8xbf16>
    "tpu.trace_start"() <{level = 10 : i32, message = "hqd,hkd->hqk"}> : () -> ()
    %cst_23 = arith.constant dense<0.000000e+00> : vector<4x16x16xf32>
    %66 = tpu.matmul %47, %56, %cst_23 {dimension_numbers = #tpu.dot_dimension_numbers<[2], [2], [1], [1], [0, 0, 0, 1, 1, 1], [0], [0]>} : vector<4x16x8xbf16>, vector<4x16x8xbf16>, vector<4x16x16xf32> -> vector<4x16x16xf32>
    "tpu.trace_stop"() : () -> ()
    %67 = arith.addf %66, %26 : vector<4x16x16xf32>
    %cst_24 = arith.constant dense<0xFF800000> : vector<4x16xf32>
    %68 = vector.multi_reduction <maximumf>, %67, %cst_24 [2] : vector<4x16x16xf32> to vector<4x16xf32>
    %69 = vector.shape_cast %68 : vector<4x16xf32> to vector<4x16x1xf32>
    %70 = vector.broadcast %69 : vector<4x16x1xf32> to vector<4x16x16xf32>
    %71 = arith.subf %67, %70 : vector<4x16x16xf32>
    %72 = math.exp %71 : vector<4x16x16xf32>
    %cst_25 = arith.constant dense<0.000000e+00> : vector<4x16xf32>
    %73 = vector.multi_reduction <add>, %72, %cst_25 [2] : vector<4x16x16xf32> to vector<4x16xf32>
    %74 = vector.shape_cast %73 : vector<4x16xf32> to vector<4x16x1xf32>
    %75 = tpu.reciprocal %74 {approx = true} : vector<4x16x1xf32> -> vector<4x16x1xf32>
    %76 = vector.broadcast %75 : vector<4x16x1xf32> to vector<4x16x16xf32>
    %77 = arith.mulf %72, %76 : vector<4x16x16xf32>
    %78 = arith.truncf %77 : vector<4x16x16xf32> to vector<4x16x16xbf16>
    "tpu.trace_start"() <{level = 10 : i32, message = "hqk,hkd->hqd"}> : () -> ()
    %cst_26 = arith.constant dense<0.000000e+00> : vector<4x16x8xf32>
    %79 = tpu.matmul %78, %65, %cst_26 {dimension_numbers = #tpu.dot_dimension_numbers<[2], [1], [1], [2], [0, 0, 0, 1, 1, 2], [0], [0]>} : vector<4x16x16xbf16>, vector<4x16x8xbf16>, vector<4x16x8xf32> -> vector<4x16x8xf32>
    "tpu.trace_stop"() : () -> ()
    %80 = arith.truncf %79 : vector<4x16x8xf32> to vector<4x16x8xbf16>
    %c0_27 = arith.constant 0 : index
    %c0_28 = arith.constant 0 : index
    %c0_29 = arith.constant 0 : index
    %c0_30 = arith.constant 0 : index
    %81 = vector.load %arg8[%c0_27, %c0_28, %c0_29, %c0_30] : memref<2x4x8x32xbf16, #tpu.memory_space<vmem>>, vector<1x4x8x32xbf16>
    %82 = vector.shape_cast %81 : vector<1x4x8x32xbf16> to vector<4x8x32xbf16>
    "tpu.trace_start"() <{level = 10 : i32, message = "hqd,hdo->hqo"}> : () -> ()
    %cst_31 = arith.constant dense<0.000000e+00> : vector<4x16x32xf32>
    %83 = tpu.matmul %80, %82, %cst_31 {dimension_numbers = #tpu.dot_dimension_numbers<[2], [1], [1], [2], [0, 0, 0, 1, 1, 2], [0], [0]>} : vector<4x16x8xbf16>, vector<4x8x32xbf16>, vector<4x16x32xf32> -> vector<4x16x32xf32>
    "tpu.trace_stop"() : () -> ()
    %cst_32 = arith.constant dense<0.000000e+00> : vector<16x32xf32>
    %84 = vector.multi_reduction <add>, %83, %cst_32 [0] : vector<4x16x32xf32> to vector<16x32xf32>
    %c0_33 = arith.constant 0 : index
    %c0_34 = arith.constant 0 : index
    %c0_35 = arith.constant 0 : index
    %85 = vector.load %arg9[%c0_33, %c0_34, %c0_35] : memref<2x1x32xf32, #tpu.memory_space<vmem>>, vector<1x1x32xf32>
    %86 = vector.shape_cast %85 : vector<1x1x32xf32> to vector<1x32xf32>
    %87 = vector.broadcast %86 : vector<1x32xf32> to vector<16x32xf32>
    %88 = arith.addf %84, %87 : vector<16x32xf32>
    %89 = arith.addf %88, %23 : vector<16x32xf32>
    %c0_36 = arith.constant 0 : index
    %c0_37 = arith.constant 0 : index
    %c0_38 = arith.constant 0 : index
    %90 = vector.load %arg10[%c0_36, %c0_37, %c0_38] : memref<2x1x32xf32, #tpu.memory_space<vmem>>, vector<1x1x32xf32>
    %91 = vector.shape_cast %90 : vector<1x1x32xf32> to vector<1x32xf32>
    %c0_39 = arith.constant 0 : index
    %c0_40 = arith.constant 0 : index
    %c0_41 = arith.constant 0 : index
    %92 = vector.load %arg11[%c0_39, %c0_40, %c0_41] : memref<2x1x32xf32, #tpu.memory_space<vmem>>, vector<1x1x32xf32>
    %93 = vector.shape_cast %92 : vector<1x1x32xf32> to vector<1x32xf32>
    %cst_42 = arith.constant dense<0.000000e+00> : vector<16xf32>
    %94 = vector.multi_reduction <add>, %89, %cst_42 [1] : vector<16x32xf32> to vector<16xf32>
    %95 = vector.shape_cast %94 : vector<16xf32> to vector<16x1xf32>
    %cst_43 = arith.constant 3.200000e+01 : f32
    %96 = vector.broadcast %cst_43 : f32 to vector<16x1xf32>
    %97 = arith.divf %95, %96 : vector<16x1xf32>
    %98 = vector.broadcast %97 : vector<16x1xf32> to vector<16x32xf32>
    %99 = arith.subf %89, %98 : vector<16x32xf32>
    %100 = arith.mulf %99, %99 : vector<16x32xf32>
    %cst_44 = arith.constant dense<0.000000e+00> : vector<16xf32>
    %101 = vector.multi_reduction <add>, %100, %cst_44 [1] : vector<16x32xf32> to vector<16xf32>
    %102 = vector.shape_cast %101 : vector<16xf32> to vector<16x1xf32>
    %cst_45 = arith.constant 3.200000e+01 : f32
    %103 = vector.broadcast %cst_45 : f32 to vector<16x1xf32>
    %104 = arith.divf %102, %103 : vector<16x1xf32>
    %cst_46 = arith.constant 9.99999996E-13 : f32
    %105 = vector.broadcast %cst_46 : f32 to vector<16x1xf32>
    %106 = arith.addf %104, %105 : vector<16x1xf32>
    %107 = math.rsqrt %106 : vector<16x1xf32>
    %108 = vector.broadcast %107 : vector<16x1xf32> to vector<16x32xf32>
    %109 = arith.mulf %99, %108 : vector<16x32xf32>
    %110 = vector.broadcast %91 : vector<1x32xf32> to vector<16x32xf32>
    %111 = arith.mulf %109, %110 : vector<16x32xf32>
    %112 = vector.broadcast %93 : vector<1x32xf32> to vector<16x32xf32>
    %113 = arith.addf %111, %112 : vector<16x32xf32>
    %114 = arith.truncf %113 : vector<16x32xf32> to vector<16x32xbf16>
    %c0_47 = arith.constant 0 : index
    %c0_48 = arith.constant 0 : index
    %c0_49 = arith.constant 0 : index
    %115 = vector.load %arg12[%c0_47, %c0_48, %c0_49] : memref<2x32x64xbf16, #tpu.memory_space<vmem>>, vector<1x32x64xbf16>
    %116 = vector.shape_cast %115 : vector<1x32x64xbf16> to vector<32x64xbf16>
    %cst_50 = arith.constant dense<0.000000e+00> : vector<16x64xf32>
    %117 = tpu.matmul %114, %116, %cst_50 {dimension_numbers = #tpu.dot_dimension_numbers<[1], [0], [0], [1], [0, 0, 1, 1], [], []>} : vector<16x32xbf16>, vector<32x64xbf16>, vector<16x64xf32> -> vector<16x64xf32>
    %c0_51 = arith.constant 0 : index
    %c0_52 = arith.constant 0 : index
    %c0_53 = arith.constant 0 : index
    %118 = vector.load %arg13[%c0_51, %c0_52, %c0_53] : memref<2x1x64xf32, #tpu.memory_space<vmem>>, vector<1x1x64xf32>
    %119 = vector.shape_cast %118 : vector<1x1x64xf32> to vector<1x64xf32>
    %120 = vector.broadcast %119 : vector<1x64xf32> to vector<16x64xf32>
    %121 = arith.addf %117, %120 : vector<16x64xf32>
    %122 = arith.mulf %121, %121 : vector<16x64xf32>
    %123 = arith.mulf %121, %122 : vector<16x64xf32>
    %cst_54 = arith.constant 4.471500e-02 : f32
    %124 = vector.broadcast %cst_54 : f32 to vector<16x64xf32>
    %125 = arith.mulf %124, %123 : vector<16x64xf32>
    %126 = arith.addf %121, %125 : vector<16x64xf32>
    %cst_55 = arith.constant 0.797884583 : f32
    %127 = vector.broadcast %cst_55 : f32 to vector<16x64xf32>
    %128 = arith.mulf %127, %126 : vector<16x64xf32>
    %129 = math.tanh %128 : vector<16x64xf32>
    %cst_56 = arith.constant 1.000000e+00 : f32
    %130 = vector.broadcast %cst_56 : f32 to vector<16x64xf32>
    %131 = arith.addf %130, %129 : vector<16x64xf32>
    %cst_57 = arith.constant 5.000000e-01 : f32
    %132 = vector.broadcast %cst_57 : f32 to vector<16x64xf32>
    %133 = arith.mulf %132, %131 : vector<16x64xf32>
    %134 = arith.mulf %121, %133 : vector<16x64xf32>
    %135 = arith.truncf %134 : vector<16x64xf32> to vector<16x64xbf16>
    %c0_58 = arith.constant 0 : index
    %c0_59 = arith.constant 0 : index
    %c0_60 = arith.constant 0 : index
    %136 = vector.load %arg14[%c0_58, %c0_59, %c0_60] : memref<2x64x32xbf16, #tpu.memory_space<vmem>>, vector<1x64x32xbf16>
    %137 = vector.shape_cast %136 : vector<1x64x32xbf16> to vector<64x32xbf16>
    %cst_61 = arith.constant dense<0.000000e+00> : vector<16x32xf32>
    %138 = tpu.matmul %135, %137, %cst_61 {dimension_numbers = #tpu.dot_dimension_numbers<[1], [0], [0], [1], [0, 0, 1, 1], [], []>} : vector<16x64xbf16>, vector<64x32xbf16>, vector<16x32xf32> -> vector<16x32xf32>
    %c0_62 = arith.constant 0 : index
    %c0_63 = arith.constant 0 : index
    %c0_64 = arith.constant 0 : index
    %139 = vector.load %arg15[%c0_62, %c0_63, %c0_64] : memref<2x1x32xf32, #tpu.memory_space<vmem>>, vector<1x1x32xf32>
    %140 = vector.shape_cast %139 : vector<1x1x32xf32> to vector<1x32xf32>
    %141 = vector.broadcast %140 : vector<1x32xf32> to vector<16x32xf32>
    %142 = arith.addf %138, %141 : vector<16x32xf32>
    %143 = arith.addf %142, %113 : vector<16x32xf32>
    %c0_65 = arith.constant 0 : index
    %c0_66 = arith.constant 0 : index
    %c0_67 = arith.constant 0 : index
    %144 = vector.load %arg16[%c0_65, %c0_66, %c0_67] : memref<2x1x32xf32, #tpu.memory_space<vmem>>, vector<1x1x32xf32>
    %145 = vector.shape_cast %144 : vector<1x1x32xf32> to vector<1x32xf32>
    %c0_68 = arith.constant 0 : index
    %c0_69 = arith.constant 0 : index
    %c0_70 = arith.constant 0 : index
    %146 = vector.load %arg17[%c0_68, %c0_69, %c0_70] : memref<2x1x32xf32, #tpu.memory_space<vmem>>, vector<1x1x32xf32>
    %147 = vector.shape_cast %146 : vector<1x1x32xf32> to vector<1x32xf32>
    %cst_71 = arith.constant dense<0.000000e+00> : vector<16xf32>
    %148 = vector.multi_reduction <add>, %143, %cst_71 [1] : vector<16x32xf32> to vector<16xf32>
    %149 = vector.shape_cast %148 : vector<16xf32> to vector<16x1xf32>
    %cst_72 = arith.constant 3.200000e+01 : f32
    %150 = vector.broadcast %cst_72 : f32 to vector<16x1xf32>
    %151 = arith.divf %149, %150 : vector<16x1xf32>
    %152 = vector.broadcast %151 : vector<16x1xf32> to vector<16x32xf32>
    %153 = arith.subf %143, %152 : vector<16x32xf32>
    %154 = arith.mulf %153, %153 : vector<16x32xf32>
    %cst_73 = arith.constant dense<0.000000e+00> : vector<16xf32>
    %155 = vector.multi_reduction <add>, %154, %cst_73 [1] : vector<16x32xf32> to vector<16xf32>
    %156 = vector.shape_cast %155 : vector<16xf32> to vector<16x1xf32>
    %cst_74 = arith.constant 3.200000e+01 : f32
    %157 = vector.broadcast %cst_74 : f32 to vector<16x1xf32>
    %158 = arith.divf %156, %157 : vector<16x1xf32>
    %cst_75 = arith.constant 9.99999996E-13 : f32
    %159 = vector.broadcast %cst_75 : f32 to vector<16x1xf32>
    %160 = arith.addf %158, %159 : vector<16x1xf32>
    %161 = math.rsqrt %160 : vector<16x1xf32>
    %162 = vector.broadcast %161 : vector<16x1xf32> to vector<16x32xf32>
    %163 = arith.mulf %153, %162 : vector<16x32xf32>
    %164 = vector.broadcast %145 : vector<1x32xf32> to vector<16x32xf32>
    %165 = arith.mulf %163, %164 : vector<16x32xf32>
    %166 = vector.broadcast %147 : vector<1x32xf32> to vector<16x32xf32>
    %167 = arith.addf %165, %166 : vector<16x32xf32>
    %168 = arith.truncf %167 : vector<16x32xf32> to vector<16x32xbf16>
    %c1 = arith.constant 1 : index
    %c0_76 = arith.constant 0 : index
    %c0_77 = arith.constant 0 : index
    %169 = vector.load %arg6[%c1, %c0_76, %c0_77] : memref<2x32x96xbf16, #tpu.memory_space<vmem>>, vector<1x32x96xbf16>
    %170 = vector.shape_cast %169 : vector<1x32x96xbf16> to vector<32x96xbf16>
    %cst_78 = arith.constant dense<0.000000e+00> : vector<16x96xf32>
    %171 = tpu.matmul %168, %170, %cst_78 {dimension_numbers = #tpu.dot_dimension_numbers<[1], [0], [0], [1], [0, 0, 1, 1], [], []>} : vector<16x32xbf16>, vector<32x96xbf16>, vector<16x96xf32> -> vector<16x96xf32>
    %c1_79 = arith.constant 1 : index
    %c0_80 = arith.constant 0 : index
    %c0_81 = arith.constant 0 : index
    %172 = vector.load %arg7[%c1_79, %c0_80, %c0_81] : memref<2x1x96xf32, #tpu.memory_space<vmem>>, vector<1x1x96xf32>
    %173 = vector.shape_cast %172 : vector<1x1x96xf32> to vector<1x96xf32>
    %174 = vector.broadcast %173 : vector<1x96xf32> to vector<16x96xf32>
    %175 = arith.addf %171, %174 : vector<16x96xf32>
    %176 = arith.truncf %175 : vector<16x96xf32> to vector<16x96xbf16>
    %177 = vector.shape_cast %175 : vector<16x96xf32> to vector<2x8x96xf32>
    %178 = vector.extract_strided_slice %177 {offsets = [0, 0, 0], sizes = [2, 1, 96], strides = [1, 1, 1]} : vector<2x8x96xf32> to vector<2x1x96xf32>
    %179 = vector.shape_cast %178 : vector<2x1x96xf32> to vector<2x96xf32>
    %180 = arith.truncf %179 : vector<2x96xf32> to vector<2x96xbf16>
    %181 = vector.shape_cast %167 : vector<16x32xf32> to vector<2x8x32xf32>
    %182 = vector.extract_strided_slice %181 {offsets = [0, 0, 0], sizes = [2, 1, 32], strides = [1, 1, 1]} : vector<2x8x32xf32> to vector<2x1x32xf32>
    %183 = vector.shape_cast %182 : vector<2x1x32xf32> to vector<2x32xf32>
    %184 = vector.extract_strided_slice %180 {offsets = [0, 0], sizes = [2, 8], strides = [1, 1]} : vector<2x96xbf16> to vector<2x8xbf16>
    %185 = vector.extract_strided_slice %180 {offsets = [0, 8], sizes = [2, 8], strides = [1, 1]} : vector<2x96xbf16> to vector<2x8xbf16>
    %186 = vector.extract_strided_slice %180 {offsets = [0, 16], sizes = [2, 8], strides = [1, 1]} : vector<2x96xbf16> to vector<2x8xbf16>
    %187 = vector.extract_strided_slice %180 {offsets = [0, 24], sizes = [2, 8], strides = [1, 1]} : vector<2x96xbf16> to vector<2x8xbf16>
    %188 = vector.shape_cast %184 : vector<2x8xbf16> to vector<1x2x8xbf16>
    %189 = vector.shape_cast %185 : vector<2x8xbf16> to vector<1x2x8xbf16>
    %190 = vector.shape_cast %186 : vector<2x8xbf16> to vector<1x2x8xbf16>
    %191 = vector.shape_cast %187 : vector<2x8xbf16> to vector<1x2x8xbf16>
    %192 = tpu.concatenate %188, %189, %190, %191 in 0 : vector<1x2x8xbf16>, vector<1x2x8xbf16>, vector<1x2x8xbf16>, vector<1x2x8xbf16> -> vector<4x2x8xbf16>
    %193 = vector.extract_strided_slice %176 {offsets = [0, 32], sizes = [16, 8], strides = [1, 1]} : vector<16x96xbf16> to vector<16x8xbf16>
    %194 = vector.extract_strided_slice %176 {offsets = [0, 40], sizes = [16, 8], strides = [1, 1]} : vector<16x96xbf16> to vector<16x8xbf16>
    %195 = vector.extract_strided_slice %176 {offsets = [0, 48], sizes = [16, 8], strides = [1, 1]} : vector<16x96xbf16> to vector<16x8xbf16>
    %196 = vector.extract_strided_slice %176 {offsets = [0, 56], sizes = [16, 8], strides = [1, 1]} : vector<16x96xbf16> to vector<16x8xbf16>
    %197 = vector.shape_cast %193 : vector<16x8xbf16> to vector<1x16x8xbf16>
    %198 = vector.shape_cast %194 : vector<16x8xbf16> to vector<1x16x8xbf16>
    %199 = vector.shape_cast %195 : vector<16x8xbf16> to vector<1x16x8xbf16>
    %200 = vector.shape_cast %196 : vector<16x8xbf16> to vector<1x16x8xbf16>
    %201 = tpu.concatenate %197, %198, %199, %200 in 0 : vector<1x16x8xbf16>, vector<1x16x8xbf16>, vector<1x16x8xbf16>, vector<1x16x8xbf16> -> vector<4x16x8xbf16>
    %202 = vector.extract_strided_slice %176 {offsets = [0, 64], sizes = [16, 8], strides = [1, 1]} : vector<16x96xbf16> to vector<16x8xbf16>
    %203 = vector.extract_strided_slice %176 {offsets = [0, 72], sizes = [16, 8], strides = [1, 1]} : vector<16x96xbf16> to vector<16x8xbf16>
    %204 = vector.extract_strided_slice %176 {offsets = [0, 80], sizes = [16, 8], strides = [1, 1]} : vector<16x96xbf16> to vector<16x8xbf16>
    %205 = vector.extract_strided_slice %176 {offsets = [0, 88], sizes = [16, 8], strides = [1, 1]} : vector<16x96xbf16> to vector<16x8xbf16>
    %206 = vector.shape_cast %202 : vector<16x8xbf16> to vector<1x16x8xbf16>
    %207 = vector.shape_cast %203 : vector<16x8xbf16> to vector<1x16x8xbf16>
    %208 = vector.shape_cast %204 : vector<16x8xbf16> to vector<1x16x8xbf16>
    %209 = vector.shape_cast %205 : vector<16x8xbf16> to vector<1x16x8xbf16>
    %210 = tpu.concatenate %206, %207, %208, %209 in 0 : vector<1x16x8xbf16>, vector<1x16x8xbf16>, vector<1x16x8xbf16>, vector<1x16x8xbf16> -> vector<4x16x8xbf16>
    "tpu.trace_start"() <{level = 10 : i32, message = "hqd,hkd->hqk"}> : () -> ()
    %cst_82 = arith.constant dense<0.000000e+00> : vector<4x2x16xf32>
    %211 = tpu.matmul %192, %201, %cst_82 {dimension_numbers = #tpu.dot_dimension_numbers<[2], [2], [1], [1], [0, 0, 0, 1, 1, 1], [0], [0]>} : vector<4x2x8xbf16>, vector<4x16x8xbf16>, vector<4x2x16xf32> -> vector<4x2x16xf32>
    "tpu.trace_stop"() : () -> ()
    %212 = arith.addf %211, %29 : vector<4x2x16xf32>
    %cst_83 = arith.constant dense<0xFF800000> : vector<4x2xf32>
    %213 = vector.multi_reduction <maximumf>, %212, %cst_83 [2] : vector<4x2x16xf32> to vector<4x2xf32>
    %214 = vector.shape_cast %213 : vector<4x2xf32> to vector<4x2x1xf32>
    %215 = vector.broadcast %214 : vector<4x2x1xf32> to vector<4x2x16xf32>
    %216 = arith.subf %212, %215 : vector<4x2x16xf32>
    %217 = math.exp %216 : vector<4x2x16xf32>
    %cst_84 = arith.constant dense<0.000000e+00> : vector<4x2xf32>
    %218 = vector.multi_reduction <add>, %217, %cst_84 [2] : vector<4x2x16xf32> to vector<4x2xf32>
    %219 = vector.shape_cast %218 : vector<4x2xf32> to vector<4x2x1xf32>
    %220 = tpu.reciprocal %219 {approx = true} : vector<4x2x1xf32> -> vector<4x2x1xf32>
    %221 = vector.broadcast %220 : vector<4x2x1xf32> to vector<4x2x16xf32>
    %222 = arith.mulf %217, %221 : vector<4x2x16xf32>
    %223 = arith.truncf %222 : vector<4x2x16xf32> to vector<4x2x16xbf16>
    "tpu.trace_start"() <{level = 10 : i32, message = "hqk,hkd->hqd"}> : () -> ()
    %cst_85 = arith.constant dense<0.000000e+00> : vector<4x2x8xf32>
    %224 = tpu.matmul %223, %210, %cst_85 {dimension_numbers = #tpu.dot_dimension_numbers<[2], [1], [1], [2], [0, 0, 0, 1, 1, 2], [0], [0]>} : vector<4x2x16xbf16>, vector<4x16x8xbf16>, vector<4x2x8xf32> -> vector<4x2x8xf32>
    "tpu.trace_stop"() : () -> ()
    %225 = arith.truncf %224 : vector<4x2x8xf32> to vector<4x2x8xbf16>
    %c1_86 = arith.constant 1 : index
    %c0_87 = arith.constant 0 : index
    %c0_88 = arith.constant 0 : index
    %c0_89 = arith.constant 0 : index
    %226 = vector.load %arg8[%c1_86, %c0_87, %c0_88, %c0_89] : memref<2x4x8x32xbf16, #tpu.memory_space<vmem>>, vector<1x4x8x32xbf16>
    %227 = vector.shape_cast %226 : vector<1x4x8x32xbf16> to vector<4x8x32xbf16>
    "tpu.trace_start"() <{level = 10 : i32, message = "hqd,hdo->hqo"}> : () -> ()
    %cst_90 = arith.constant dense<0.000000e+00> : vector<4x2x32xf32>
    %228 = tpu.matmul %225, %227, %cst_90 {dimension_numbers = #tpu.dot_dimension_numbers<[2], [1], [1], [2], [0, 0, 0, 1, 1, 2], [0], [0]>} : vector<4x2x8xbf16>, vector<4x8x32xbf16>, vector<4x2x32xf32> -> vector<4x2x32xf32>
    "tpu.trace_stop"() : () -> ()
    %cst_91 = arith.constant dense<0.000000e+00> : vector<2x32xf32>
    %229 = vector.multi_reduction <add>, %228, %cst_91 [0] : vector<4x2x32xf32> to vector<2x32xf32>
    %c1_92 = arith.constant 1 : index
    %c0_93 = arith.constant 0 : index
    %c0_94 = arith.constant 0 : index
    %230 = vector.load %arg9[%c1_92, %c0_93, %c0_94] : memref<2x1x32xf32, #tpu.memory_space<vmem>>, vector<1x1x32xf32>
    %231 = vector.shape_cast %230 : vector<1x1x32xf32> to vector<1x32xf32>
    %232 = vector.broadcast %231 : vector<1x32xf32> to vector<2x32xf32>
    %233 = arith.addf %229, %232 : vector<2x32xf32>
    %234 = arith.addf %233, %183 : vector<2x32xf32>
    %c1_95 = arith.constant 1 : index
    %c0_96 = arith.constant 0 : index
    %c0_97 = arith.constant 0 : index
    %235 = vector.load %arg10[%c1_95, %c0_96, %c0_97] : memref<2x1x32xf32, #tpu.memory_space<vmem>>, vector<1x1x32xf32>
    %236 = vector.shape_cast %235 : vector<1x1x32xf32> to vector<1x32xf32>
    %c1_98 = arith.constant 1 : index
    %c0_99 = arith.constant 0 : index
    %c0_100 = arith.constant 0 : index
    %237 = vector.load %arg11[%c1_98, %c0_99, %c0_100] : memref<2x1x32xf32, #tpu.memory_space<vmem>>, vector<1x1x32xf32>
    %238 = vector.shape_cast %237 : vector<1x1x32xf32> to vector<1x32xf32>
    %cst_101 = arith.constant dense<0.000000e+00> : vector<2xf32>
    %239 = vector.multi_reduction <add>, %234, %cst_101 [1] : vector<2x32xf32> to vector<2xf32>
    %240 = vector.shape_cast %239 : vector<2xf32> to vector<2x1xf32>
    %cst_102 = arith.constant 3.200000e+01 : f32
    %241 = vector.broadcast %cst_102 : f32 to vector<2x1xf32>
    %242 = arith.divf %240, %241 : vector<2x1xf32>
    %243 = vector.broadcast %242 : vector<2x1xf32> to vector<2x32xf32>
    %244 = arith.subf %234, %243 : vector<2x32xf32>
    %245 = arith.mulf %244, %244 : vector<2x32xf32>
    %cst_103 = arith.constant dense<0.000000e+00> : vector<2xf32>
    %246 = vector.multi_reduction <add>, %245, %cst_103 [1] : vector<2x32xf32> to vector<2xf32>
    %247 = vector.shape_cast %246 : vector<2xf32> to vector<2x1xf32>
    %cst_104 = arith.constant 3.200000e+01 : f32
    %248 = vector.broadcast %cst_104 : f32 to vector<2x1xf32>
    %249 = arith.divf %247, %248 : vector<2x1xf32>
    %cst_105 = arith.constant 9.99999996E-13 : f32
    %250 = vector.broadcast %cst_105 : f32 to vector<2x1xf32>
    %251 = arith.addf %249, %250 : vector<2x1xf32>
    %252 = math.rsqrt %251 : vector<2x1xf32>
    %253 = vector.broadcast %252 : vector<2x1xf32> to vector<2x32xf32>
    %254 = arith.mulf %244, %253 : vector<2x32xf32>
    %255 = vector.broadcast %236 : vector<1x32xf32> to vector<2x32xf32>
    %256 = arith.mulf %254, %255 : vector<2x32xf32>
    %257 = vector.broadcast %238 : vector<1x32xf32> to vector<2x32xf32>
    %258 = arith.addf %256, %257 : vector<2x32xf32>
    %259 = arith.truncf %258 : vector<2x32xf32> to vector<2x32xbf16>
    %c1_106 = arith.constant 1 : index
    %c0_107 = arith.constant 0 : index
    %c0_108 = arith.constant 0 : index
    %260 = vector.load %arg12[%c1_106, %c0_107, %c0_108] : memref<2x32x64xbf16, #tpu.memory_space<vmem>>, vector<1x32x64xbf16>
    %261 = vector.shape_cast %260 : vector<1x32x64xbf16> to vector<32x64xbf16>
    %cst_109 = arith.constant dense<0.000000e+00> : vector<2x64xf32>
    %262 = tpu.matmul %259, %261, %cst_109 {dimension_numbers = #tpu.dot_dimension_numbers<[1], [0], [0], [1], [0, 0, 1, 1], [], []>} : vector<2x32xbf16>, vector<32x64xbf16>, vector<2x64xf32> -> vector<2x64xf32>
    %c1_110 = arith.constant 1 : index
    %c0_111 = arith.constant 0 : index
    %c0_112 = arith.constant 0 : index
    %263 = vector.load %arg13[%c1_110, %c0_111, %c0_112] : memref<2x1x64xf32, #tpu.memory_space<vmem>>, vector<1x1x64xf32>
    %264 = vector.shape_cast %263 : vector<1x1x64xf32> to vector<1x64xf32>
    %265 = vector.broadcast %264 : vector<1x64xf32> to vector<2x64xf32>
    %266 = arith.addf %262, %265 : vector<2x64xf32>
    %267 = arith.mulf %266, %266 : vector<2x64xf32>
    %268 = arith.mulf %266, %267 : vector<2x64xf32>
    %cst_113 = arith.constant 4.471500e-02 : f32
    %269 = vector.broadcast %cst_113 : f32 to vector<2x64xf32>
    %270 = arith.mulf %269, %268 : vector<2x64xf32>
    %271 = arith.addf %266, %270 : vector<2x64xf32>
    %cst_114 = arith.constant 0.797884583 : f32
    %272 = vector.broadcast %cst_114 : f32 to vector<2x64xf32>
    %273 = arith.mulf %272, %271 : vector<2x64xf32>
    %274 = math.tanh %273 : vector<2x64xf32>
    %cst_115 = arith.constant 1.000000e+00 : f32
    %275 = vector.broadcast %cst_115 : f32 to vector<2x64xf32>
    %276 = arith.addf %275, %274 : vector<2x64xf32>
    %cst_116 = arith.constant 5.000000e-01 : f32
    %277 = vector.broadcast %cst_116 : f32 to vector<2x64xf32>
    %278 = arith.mulf %277, %276 : vector<2x64xf32>
    %279 = arith.mulf %266, %278 : vector<2x64xf32>
    %280 = arith.truncf %279 : vector<2x64xf32> to vector<2x64xbf16>
    %c1_117 = arith.constant 1 : index
    %c0_118 = arith.constant 0 : index
    %c0_119 = arith.constant 0 : index
    %281 = vector.load %arg14[%c1_117, %c0_118, %c0_119] : memref<2x64x32xbf16, #tpu.memory_space<vmem>>, vector<1x64x32xbf16>
    %282 = vector.shape_cast %281 : vector<1x64x32xbf16> to vector<64x32xbf16>
    %cst_120 = arith.constant dense<0.000000e+00> : vector<2x32xf32>
    %283 = tpu.matmul %280, %282, %cst_120 {dimension_numbers = #tpu.dot_dimension_numbers<[1], [0], [0], [1], [0, 0, 1, 1], [], []>} : vector<2x64xbf16>, vector<64x32xbf16>, vector<2x32xf32> -> vector<2x32xf32>
    %c1_121 = arith.constant 1 : index
    %c0_122 = arith.constant 0 : index
    %c0_123 = arith.constant 0 : index
    %284 = vector.load %arg15[%c1_121, %c0_122, %c0_123] : memref<2x1x32xf32, #tpu.memory_space<vmem>>, vector<1x1x32xf32>
    %285 = vector.shape_cast %284 : vector<1x1x32xf32> to vector<1x32xf32>
    %286 = vector.broadcast %285 : vector<1x32xf32> to vector<2x32xf32>
    %287 = arith.addf %283, %286 : vector<2x32xf32>
    %288 = arith.addf %287, %258 : vector<2x32xf32>
    %c1_124 = arith.constant 1 : index
    %c0_125 = arith.constant 0 : index
    %c0_126 = arith.constant 0 : index
    %289 = vector.load %arg16[%c1_124, %c0_125, %c0_126] : memref<2x1x32xf32, #tpu.memory_space<vmem>>, vector<1x1x32xf32>
    %290 = vector.shape_cast %289 : vector<1x1x32xf32> to vector<1x32xf32>
    %c1_127 = arith.constant 1 : index
    %c0_128 = arith.constant 0 : index
    %c0_129 = arith.constant 0 : index
    %291 = vector.load %arg17[%c1_127, %c0_128, %c0_129] : memref<2x1x32xf32, #tpu.memory_space<vmem>>, vector<1x1x32xf32>
    %292 = vector.shape_cast %291 : vector<1x1x32xf32> to vector<1x32xf32>
    %cst_130 = arith.constant dense<0.000000e+00> : vector<2xf32>
    %293 = vector.multi_reduction <add>, %288, %cst_130 [1] : vector<2x32xf32> to vector<2xf32>
    %294 = vector.shape_cast %293 : vector<2xf32> to vector<2x1xf32>
    %cst_131 = arith.constant 3.200000e+01 : f32
    %295 = vector.broadcast %cst_131 : f32 to vector<2x1xf32>
    %296 = arith.divf %294, %295 : vector<2x1xf32>
    %297 = vector.broadcast %296 : vector<2x1xf32> to vector<2x32xf32>
    %298 = arith.subf %288, %297 : vector<2x32xf32>
    %299 = arith.mulf %298, %298 : vector<2x32xf32>
    %cst_132 = arith.constant dense<0.000000e+00> : vector<2xf32>
    %300 = vector.multi_reduction <add>, %299, %cst_132 [1] : vector<2x32xf32> to vector<2xf32>
    %301 = vector.shape_cast %300 : vector<2xf32> to vector<2x1xf32>
    %cst_133 = arith.constant 3.200000e+01 : f32
    %302 = vector.broadcast %cst_133 : f32 to vector<2x1xf32>
    %303 = arith.divf %301, %302 : vector<2x1xf32>
    %cst_134 = arith.constant 9.99999996E-13 : f32
    %304 = vector.broadcast %cst_134 : f32 to vector<2x1xf32>
    %305 = arith.addf %303, %304 : vector<2x1xf32>
    %306 = math.rsqrt %305 : vector<2x1xf32>
    %307 = vector.broadcast %306 : vector<2x1xf32> to vector<2x32xf32>
    %308 = arith.mulf %298, %307 : vector<2x32xf32>
    %309 = vector.broadcast %290 : vector<1x32xf32> to vector<2x32xf32>
    %310 = arith.mulf %308, %309 : vector<2x32xf32>
    %311 = vector.broadcast %292 : vector<1x32xf32> to vector<2x32xf32>
    %312 = arith.addf %310, %311 : vector<2x32xf32>
    %c0_135 = arith.constant 0 : index
    %c0_136 = arith.constant 0 : index
    %c0_137 = arith.constant 0 : index
    %313 = vector.load %arg18[%c0_135, %c0_136, %c0_137] : memref<1x2x32xf32, #tpu.memory_space<vmem>>, vector<1x2x32xf32>
    %314 = vector.shape_cast %313 : vector<1x2x32xf32> to vector<2x32xf32>
    %315 = vector.shape_cast %312 : vector<2x32xf32> to vector<1x2x32xf32>
    tpu.vector_store %arg18[%c0_135, %c0_136, %c0_137], %315 {strides = array<i32>} : memref<1x2x32xf32, #tpu.memory_space<vmem>>, vector<1x2x32xf32>,
    return
  }
  func.func @transform_0(%arg0: i32) -> (i32, i32, i32) {
    %c0_i32 = arith.constant 0 : i32
    %c0_i32_0 = arith.constant 0 : i32
    %c0_i32_1 = arith.constant 0 : i32
    return %arg0, %c0_i32, %c0_i32_0 : i32, i32, i32
  }
  func.func @transform_1(%arg0: i32) -> (i32, i32, i32) {
    %c0_i32 = arith.constant 0 : i32
    %c0_i32_0 = arith.constant 0 : i32
    %c0_i32_1 = arith.constant 0 : i32
    return %arg0, %c0_i32, %c0_i32_0 : i32, i32, i32
  }
  func.func @transform_2(%arg0: i32) -> (i32, i32, i32) {
    %c0_i32 = arith.constant 0 : i32
    %c0_i32_0 = arith.constant 0 : i32
    %c0_i32_1 = arith.constant 0 : i32
    return %arg0, %c0_i32, %c0_i32_0 : i32, i32, i32
  }
  func.func @transform_3(%arg0: i32) -> (i32, i32) {
    %c0_i32 = arith.constant 0 : i32
    %c0_i32_0 = arith.constant 0 : i32
    %c0_i32_1 = arith.constant 0 : i32
    return %c0_i32, %c0_i32_0 : i32, i32
  }
  func.func @transform_4(%arg0: i32) -> (i32, i32) {
    %c0_i32 = arith.constant 0 : i32
    %c0_i32_0 = arith.constant 0 : i32
    %c0_i32_1 = arith.constant 0 : i32
    return %c0_i32, %c0_i32_0 : i32, i32
  }
  func.func @transform_5(%arg0: i32) -> (i32, i32, i32) {
    %c0_i32 = arith.constant 0 : i32
    %c0_i32_0 = arith.constant 0 : i32
    %c0_i32_1 = arith.constant 0 : i32
    %c0_i32_2 = arith.constant 0 : i32
    return %c0_i32, %c0_i32_0, %c0_i32_1 : i32, i32, i32
  }
  func.func @transform_6(%arg0: i32) -> (i32, i32, i32) {
    %c0_i32 = arith.constant 0 : i32
    %c0_i32_0 = arith.constant 0 : i32
    %c0_i32_1 = arith.constant 0 : i32
    %c0_i32_2 = arith.constant 0 : i32
    return %c0_i32, %c0_i32_0, %c0_i32_1 : i32, i32, i32
  }
  func.func @transform_7(%arg0: i32) -> (i32, i32, i32, i32) {
    %c0_i32 = arith.constant 0 : i32
    %c0_i32_0 = arith.constant 0 : i32
    %c0_i32_1 = arith.constant 0 : i32
    %c0_i32_2 = arith.constant 0 : i32
    %c0_i32_3 = arith.constant 0 : i32
    return %c0_i32, %c0_i32_0, %c0_i32_1, %c0_i32_2 : i32, i32, i32, i32
  }
  func.func @transform_8(%arg0: i32) -> (i32, i32, i32) {
    %c0_i32 = arith.constant 0 : i32
    %c0_i32_0 = arith.constant 0 : i32
    %c0_i32_1 = arith.constant 0 : i32
    %c0_i32_2 = arith.constant 0 : i32
    return %c0_i32, %c0_i32_0, %c0_i32_1 : i32, i32, i32
  }
  func.func @transform_9(%arg0: i32) -> (i32, i32, i32) {
    %c0_i32 = arith.constant 0 : i32
    %c0_i32_0 = arith.constant 0 : i32
    %c0_i32_1 = arith.constant 0 : i32
    %c0_i32_2 = arith.constant 0 : i32
    return %c0_i32, %c0_i32_0, %c0_i32_1 : i32, i32, i32
  }
  func.func @transform_10(%arg0: i32) -> (i32, i32, i32) {
    %c0_i32 = arith.constant 0 : i32
    %c0_i32_0 = arith.constant 0 : i32
    %c0_i32_1 = arith.constant 0 : i32
    %c0_i32_2 = arith.constant 0 : i32
    return %c0_i32, %c0_i32_0, %c0_i32_1 : i32, i32, i32
  }
  func.func @transform_11(%arg0: i32) -> (i32, i32, i32) {
    %c0_i32 = arith.constant 0 : i32
    %c0_i32_0 = arith.constant 0 : i32
    %c0_i32_1 = arith.constant 0 : i32
    %c0_i32_2 = arith.constant 0 : i32
    return %c0_i32, %c0_i32_0, %c0_i32_1 : i32, i32, i32
  }
  func.func @transform_12(%arg0: i32) -> (i32, i32, i32) {
    %c0_i32 = arith.constant 0 : i32
    %c0_i32_0 = arith.constant 0 : i32
    %c0_i32_1 = arith.constant 0 : i32
    %c0_i32_2 = arith.constant 0 : i32
    return %c0_i32, %c0_i32_0, %c0_i32_1 : i32, i32, i32
  }
  func.func @transform_13(%arg0: i32) -> (i32, i32, i32) {
    %c0_i32 = arith.constant 0 : i32
    %c0_i32_0 = arith.constant 0 : i32
    %c0_i32_1 = arith.constant 0 : i32
    %c0_i32_2 = arith.constant 0 : i32
    return %c0_i32, %c0_i32_0, %c0_i32_1 : i32, i32, i32
  }
  func.func @transform_14(%arg0: i32) -> (i32, i32, i32) {
    %c0_i32 = arith.constant 0 : i32
    %c0_i32_0 = arith.constant 0 : i32
    %c0_i32_1 = arith.constant 0 : i32
    %c0_i32_2 = arith.constant 0 : i32
    return %c0_i32, %c0_i32_0, %c0_i32_1 : i32, i32, i32
  }
  func.func @transform_15(%arg0: i32) -> (i32, i32, i32) {
    %c0_i32 = arith.constant 0 : i32
    %c0_i32_0 = arith.constant 0 : i32
    %c0_i32_1 = arith.constant 0 : i32
    %c0_i32_2 = arith.constant 0 : i32
    return %c0_i32, %c0_i32_0, %c0_i32_1 : i32, i32, i32
  }
  func.func @transform_16(%arg0: i32) -> (i32, i32, i32) {
    %c0_i32 = arith.constant 0 : i32
    %c0_i32_0 = arith.constant 0 : i32
    %c0_i32_1 = arith.constant 0 : i32
    %c0_i32_2 = arith.constant 0 : i32
    return %c0_i32, %c0_i32_0, %c0_i32_1 : i32, i32, i32
  }
  func.func @transform_17(%arg0: i32) -> (i32, i32, i32) {
    %c0_i32 = arith.constant 0 : i32
    %c0_i32_0 = arith.constant 0 : i32
    %c0_i32_1 = arith.constant 0 : i32
    return %arg0, %c0_i32, %c0_i32_0 : i32, i32, i32
  }
}

</mosaic_0001>

<llo_original>
// kernel: encoder_only_forward.1
$region0: #{encoder_only_forward.1}
  #allocation0 [shape = 'u32[]', space=smem, size = 0x4, offset = 0x4, fixed_abs, tag = 'smem constant byte address 0x4 - core index']
  #allocation1 [shape = 'u32[144,128]{1,0:T(1,128)}', space=vmem, size = 0x12000, scoped, tag = 'internal scratch']
  %s0 = inlined_call_operand.vmem [shape: f32[1,16,32], index: 0, kind: input, shape index: {}]
  %s1 = inlined_call_operand.vmem [shape: f32[1,16,16], index: 1, kind: input, shape index: {}]
  %s2 = inlined_call_operand.vmem [shape: f32[1,2,16], index: 2, kind: input, shape index: {}]
  %s3 = inlined_call_operand.vmem [shape: f32[1,32], index: 3, kind: input, shape index: {}]
  %s4 = inlined_call_operand.vmem [shape: f32[1,32], index: 4, kind: input, shape index: {}]
  %s5 = inlined_call_operand.vmem [shape: bf16[2,32,96], index: 5, kind: input, shape index: {}]
  %s6 = inlined_call_operand.vmem [shape: f32[2,1,96], index: 6, kind: input, shape index: {}]
  %s7 = inlined_call_operand.vmem [shape: bf16[2,4,8,32], index: 7, kind: input, shape index: {}]
  %s8 = inlined_call_operand.vmem [shape: f32[2,1,32], index: 8, kind: input, shape index: {}]
  %s9 = inlined_call_operand.vmem [shape: f32[2,1,32], index: 9, kind: input, shape index: {}]
  %s10 = inlined_call_operand.vmem [shape: f32[2,1,32], index: 10, kind: input, shape index: {}]
  %s11 = inlined_call_operand.vmem [shape: bf16[2,32,64], index: 11, kind: input, shape index: {}]
  %s12 = inlined_call_operand.vmem [shape: f32[2,1,64], index: 12, kind: input, shape index: {}]
  %s13 = inlined_call_operand.vmem [shape: bf16[2,64,32], index: 13, kind: input, shape index: {}]
  %s14 = inlined_call_operand.vmem [shape: f32[2,1,32], index: 14, kind: input, shape index: {}]
  %s15 = inlined_call_operand.vmem [shape: f32[2,1,32], index: 15, kind: input, shape index: {}]
  %s16 = inlined_call_operand.vmem [shape: f32[2,1,32], index: 16, kind: input, shape index: {}]
  %s17 = inlined_call_operand.hbm [shape: f32[1,2,32], index: 17, kind: output, shape index: {}]
  %s18 = sld [smem:[#allocation0]]
  $region78: #{encoder_only_forward.1} parent=0
    _
  %s20 = ssub.s32 1, %s18
  %s21 = scalar_select 0, %s20, %s18
  $region1: #{encoder_only_forward.1} parent=0
    #allocation2 [shape = 'u8[1024]{0}', space=vmem, size = 0x400, scoped, tag = 'output window, operand 0, single buffered']
    #allocation3 [shape = 's32[1]{0}', space=sflag, size = 0x4, scoped, tag = 'scoped memory for encoder_only_forward.1']
    %22 = vsyncpa [#allocation3], 0
    // Predicated region
    $region2: #{encoder_only_forward.1} parent=1 // pred_check
      _
    $region3: #{encoder_only_forward.1} parent=1 // pred_check_branch
      %24 = sbr.rel (0) target = $region5
    $region4: #{encoder_only_forward.1} parent=1 // pred_region
      _
    $region5: #{encoder_only_forward.1} parent=1 // pred_fallthru
      _
    // Predicated region
    $region6: #{encoder_only_forward.1} parent=1 // pred_check
      _
    $region7: #{encoder_only_forward.1} parent=1 // pred_check_branch
      %26 = sbr.rel (0) target = $region9
    $region8: #{encoder_only_forward.1} parent=1 // pred_region
      _
    $region9: #{encoder_only_forward.1} parent=1 // pred_fallthru
      _
    // Predicated region
    $region10: #{encoder_only_forward.1} parent=1 // pred_check
      _
    $region11: #{encoder_only_forward.1} parent=1 // pred_check_branch
      %28 = sbr.rel (0) target = $region13
    $region12: #{encoder_only_forward.1} parent=1 // pred_region
      _
    $region13: #{encoder_only_forward.1} parent=1 // pred_fallthru
      _
    // Predicated region
    $region14: #{encoder_only_forward.1} parent=1 // pred_check
      _
    $region15: #{encoder_only_forward.1} parent=1 // pred_check_branch
      %30 = sbr.rel (0) target = $region17
    $region16: #{encoder_only_forward.1} parent=1 // pred_region
      _
    $region17: #{encoder_only_forward.1} parent=1 // pred_fallthru
      _
    // Predicated region
    $region18: #{encoder_only_forward.1} parent=1 // pred_check
      _
    $region19: #{encoder_only_forward.1} parent=1 // pred_check_branch
      %32 = sbr.rel (0) target = $region21
    $region20: #{encoder_only_forward.1} parent=1 // pred_region
      _
    $region21: #{encoder_only_forward.1} parent=1 // pred_fallthru
      _
    // Predicated region
    $region22: #{encoder_only_forward.1} parent=1 // pred_check
      _
    $region23: #{encoder_only_forward.1} parent=1 // pred_check_branch
      %34 = sbr.rel (0) target = $region25
    $region24: #{encoder_only_forward.1} parent=1 // pred_region
      _
    $region25: #{encoder_only_forward.1} parent=1 // pred_fallthru
      _
    // Predicated region
    $region26: #{encoder_only_forward.1} parent=1 // pred_check
      _
    $region27: #{encoder_only_forward.1} parent=1 // pred_check_branch
      %36 = sbr.rel (0) target = $region29
    $region28: #{encoder_only_forward.1} parent=1 // pred_region
      _
    $region29: #{encoder_only_forward.1} parent=1 // pred_fallthru
      _
    // Predicated region
    $region30: #{encoder_only_forward.1} parent=1 // pred_check
      _
    $region31: #{encoder_only_forward.1} parent=1 // pred_check_branch
      %38 = sbr.rel (0) target = $region33
    $region32: #{encoder_only_forward.1} parent=1 // pred_region
      _
    $region33: #{encoder_only_forward.1} parent=1 // pred_fallthru
      _
    // Predicated region
    $region34: #{encoder_only_forward.1} parent=1 // pred_check
      _
    $region35: #{encoder_only_forward.1} parent=1 // pred_check_branch
      %40 = sbr.rel (0) target = $region37
    $region36: #{encoder_only_forward.1} parent=1 // pred_region
      _
    $region37: #{encoder_only_forward.1} parent=1 // pred_fallthru
      _
    // Predicated region
    $region38: #{encoder_only_forward.1} parent=1 // pred_check
      _
    $region39: #{encoder_only_forward.1} parent=1 // pred_check_branch
      %42 = sbr.rel (0) target = $region41
    $region40: #{encoder_only_forward.1} parent=1 // pred_region
      _
    $region41: #{encoder_only_forward.1} parent=1 // pred_fallthru
      _
    // Predicated region
    $region42: #{encoder_only_forward.1} parent=1 // pred_check
      _
    $region43: #{encoder_only_forward.1} parent=1 // pred_check_branch
      %44 = sbr.rel (0) target = $region45
    $region44: #{encoder_only_forward.1} parent=1 // pred_region
      _
    $region45: #{encoder_only_forward.1} parent=1 // pred_fallthru
      _
    // Predicated region
    $region46: #{encoder_only_forward.1} parent=1 // pred_check
      _
    $region47: #{encoder_only_forward.1} parent=1 // pred_check_branch
      %46 = sbr.rel (0) target = $region49
    $region48: #{encoder_only_forward.1} parent=1 // pred_region
      _
    $region49: #{encoder_only_forward.1} parent=1 // pred_fallthru
      _
    // Predicated region
    $region50: #{encoder_only_forward.1} parent=1 // pred_check
      _
    $region51: #{encoder_only_forward.1} parent=1 // pred_check_branch
      %48 = sbr.rel (0) target = $region53
    $region52: #{encoder_only_forward.1} parent=1 // pred_region
      _
    $region53: #{encoder_only_forward.1} parent=1 // pred_fallthru
      _
    // Predicated region
    $region54: #{encoder_only_forward.1} parent=1 // pred_check
      _
    $region55: #{encoder_only_forward.1} parent=1 // pred_check_branch
      %50 = sbr.rel (0) target = $region57
    $region56: #{encoder_only_forward.1} parent=1 // pred_region
      _
    $region57: #{encoder_only_forward.1} parent=1 // pred_fallthru
      _
    // Predicated region
    $region58: #{encoder_only_forward.1} parent=1 // pred_check
      _
    $region59: #{encoder_only_forward.1} parent=1 // pred_check_branch
      %52 = sbr.rel (0) target = $region61
    $region60: #{encoder_only_forward.1} parent=1 // pred_region
      _
    $region61: #{encoder_only_forward.1} parent=1 // pred_fallthru
      _
    // Predicated region
    $region62: #{encoder_only_forward.1} parent=1 // pred_check
      _
    $region63: #{encoder_only_forward.1} parent=1 // pred_check_branch
      %54 = sbr.rel (0) target = $region65
    $region64: #{encoder_only_forward.1} parent=1 // pred_region
      _
    $region65: #{encoder_only_forward.1} parent=1 // pred_fallthru
      _
    // Predicated region
    $region66: #{encoder_only_forward.1} parent=1 // pred_check
      _
    $region67: #{encoder_only_forward.1} parent=1 // pred_check_branch
      %56 = sbr.rel (0) target = $region69
    $region68: #{encoder_only_forward.1} parent=1 // pred_region
      _
    $region69: #{encoder_only_forward.1} parent=1 // pred_fallthru
      _
    %v58 = vld [vmem:[%s0] sm:$0xff]
    %v59 = vld [vmem:[%s0 + $0x8] sm:$0xff]
    %v60 = vld [vmem:[%s3] sm:$0x1]
    %v61 = vld [vmem:[%s4] sm:$0x1]
    %vm62 = vcmask 261120
    %v63 = vsel %vm62, %v58, 0.0
    %64 = vadd.xlane.f32.xlu0 %v63
    %v65 = vpop.xlane.xlu0 %64
    %v66 = vsel %vm62, %v59, 0.0
    %67 = vadd.xlane.f32.xlu0 %v66
    %v68 = vpop.xlane.xlu0 %67
    %v69 = vrcp.pop 32.0
    %v70 = vmul.f32 %v65, %v69
    %v71 = vmul.f32 %v68, %v69
    %v72 = vsub.f32 %v58, %v70
    %v73 = vsub.f32 %v59, %v71
    %v74 = vmul.f32 %v72, %v72
    %v75 = vmul.f32 %v73, %v73
    %v76 = vsel %vm62, %v74, 0.0
    %77 = vadd.xlane.f32.xlu0 %v76
    %v78 = vpop.xlane.xlu0 %77
    %v79 = vsel %vm62, %v75, 0.0
    %80 = vadd.xlane.f32.xlu0 %v79
    %v81 = vpop.xlane.xlu0 %80
    %v82 = vmul.f32 %v78, %v69
    %v83 = vmul.f32 %v81, %v69
    %v84 = vadd.f32 %v82, 1e-12
    %v85 = vadd.f32 %v83, 1e-12
    %v86 = vrsqrt.pop %v84
    %v87 = vrsqrt.pop %v85
    %v88 = vmul.f32 %v72, %v86
    %v89 = vmul.f32 %v73, %v87
    %v91 = vlaneseq
    %v92 = vshrl.u32 %v91, 7
    %v93 = vsub.s32 0, %v92
    %v94 = vrot.slane %v60, %v93
    %v96 = vmul.f32 %v88, %v94
    %v97 = vmul.f32 %v89, %v94
    %v99 = vlaneseq
    %v100 = vshrl.u32 %v99, 7
    %v101 = vsub.s32 0, %v100
    %v102 = vrot.slane %v61, %v101
    %v104 = vadd.f32 %v96, %v102
    %v105 = vadd.f32 %v97, %v102
    %v106 = vld [vmem:[%s1] sm:$0xff]
    %v107 = vld [vmem:[%s1 + $0x8] sm:$0xff]
    %v108 = vld [vmem:[%s2] sm:$0x3]
    %v109 = vpack.c.bf16 %v105, %v104
    %v110 = vld [vmem:[%s5] sm:$0xf]
    %v111 = vld [vmem:[%s5 + $0x4] sm:$0xf]
    %v112 = vld [vmem:[%s5 + $0x8] sm:$0xf]
    %v113 = vld [vmem:[%s5 + $0xc] sm:$0xf]
    %v114 = vld [vmem:[%s6] sm:$0x1]
    %v116 = vlaneseq
    %v117 = vshrl.u32 %v116, 7
    %v118 = vsub.s32 0, %v117
    %v119 = vrot.slane %v114, %v118
    %v125 = vunpack.c.l.b16 %v110
    %v126 = vunpack.c.l.b16 %v111
    %v127 = vunpack.c.l.b16 %v112
    %v128 = vunpack.c.l.b16 %v113
    %v129 = vpack.c.b16 %v126, %v125
    %v130 = vpack.c.b16 %v128, %v127
    %v134 = vsel %vm62, %v109, 0
    %136 = vmatprep.subr.bf16.mxu0 0
    %137 = vmatpush1.bf16.msra.mxu0 %v129
    %138 = vmatprep.subr.bf16.mxu0 0
    %139 = vmatpush1.bf16.msra.mxu0 %v130
    %140 = vmatprep.subr.bf16.mxu0 0
    %141 = vmatpush1.bf16.msra.mxu0 0
    %142 = vmatprep.subr.bf16.mxu0 0
    %143 = vmatpush1.bf16.msra.mxu0 0
    %144 = vmatprep.subr.bf16.mxu0 0
    %145 = vmatpush1.bf16.msra.mxu0 0
    %146 = vmatprep.subr.bf16.mxu0 0
    %147 = vmatpush1.bf16.msra.mxu0 0
    %148 = vmatprep.subr.bf16.mxu0 0
    %149 = vmatpush1.bf16.msra.mxu0 0
    %150 = vmatprep.subr.bf16.mxu0 0
    %151 = vmatpush1.bf16.msra.mxu0 0
    %152 = vmatprep.subr.bf16.mxu0 0
    %153 = vmatpush1.bf16.msra.mxu0 0
    %154 = vmatprep.subr.bf16.mxu0 0
    %155 = vmatpush1.bf16.msra.mxu0 0
    %156 = vmatprep.subr.bf16.mxu0 0
    %157 = vmatpush1.bf16.msra.mxu0 0
    %158 = vmatprep.subr.bf16.mxu0 0
    %159 = vmatpush1.bf16.msra.mxu0 0
    %160 = vmatprep.subr.bf16.mxu0 0
    %161 = vmatpush1.bf16.msra.mxu0 0
    %162 = vmatprep.subr.bf16.mxu0 0
    %163 = vmatpush1.bf16.msra.mxu0 0
    %164 = vmatprep.subr.bf16.mxu0 0
    %165 = vmatpush1.bf16.msra.mxu0 0
    %166 = vmatprep.subr.bf16.mxu0 0
    %167 = vmatpush1.bf16.msra.mxu0 0
    %168 = vmatprep.mubr.bf16.mxu0 0
    %169 = vmatmul.mubr.bf16.gmra.mrb[0].mxu0 %v134
    %v170 = vpop.f32.mrb[0].mxu0
    %v171 = vadd.f32 %v119, %v170
    %v172 = vpop.f32.mrb[0].mxu0
    %v173 = vpop.f32.mrb[0].mxu0
    %v174 = vadd.f32 %v119, %v173
    %v175 = vpop.f32.mrb[0].mxu0
    %176 = vdwg.mxu0
    %v177 = vpack.c.bf16 %v174, %v171
    %179 = vrot.lane.b32.xlu0 %v177, 120
    %v180 = vpop.permute.xlu0 %179
    %181 = vrot.lane.b32.xlu0 %v177, 112
    %v182 = vpop.permute.xlu0 %181
    %183 = vrot.lane.b32.xlu0 %v177, 104
    %v184 = vpop.permute.xlu0 %183
    %185 = vrot.lane.b32.xlu0 %v177, 96
    %v186 = vpop.permute.xlu0 %185
    %vm187 = vcmask 64512
    %v189 = vsel %vm187, %v177, 0
    %v192 = vsel %vm187, %v186, 0
    %194 = vmatprep.subr.bf16.mxu0 0
    %195 = vmatpush1.bf16.xpose.msra.mxu0 %v192
    %196 = vmatprep.subr.bf16.mxu0 0
    %197 = vmatpush1.bf16.xpose.msra.mxu0 0
    %198 = vmatprep.subr.bf16.mxu0 0
    %199 = vmatpush1.bf16.xpose.msra.mxu0 0
    %200 = vmatprep.subr.bf16.mxu0 0
    %201 = vmatpush1.bf16.xpose.msra.mxu0 0
    %202 = vmatprep.subr.bf16.mxu0 0
    %203 = vmatpush1.bf16.xpose.msra.mxu0 0
    %204 = vmatprep.subr.bf16.mxu0 0
    %205 = vmatpush1.bf16.xpose.msra.mxu0 0
    %206 = vmatprep.subr.bf16.mxu0 0
    %207 = vmatpush1.bf16.xpose.msra.mxu0 0
    %208 = vmatprep.subr.bf16.mxu0 0
    %209 = vmatpush1.bf16.xpose.msra.mxu0 0
    %210 = vmatprep.subr.bf16.mxu0 0
    %211 = vmatpush1.bf16.xpose.msra.mxu0 0
    %212 = vmatprep.subr.bf16.mxu0 0
    %213 = vmatpush1.bf16.xpose.msra.mxu0 0
    %214 = vmatprep.subr.bf16.mxu0 0
    %215 = vmatpush1.bf16.xpose.msra.mxu0 0
    %216 = vmatprep.subr.bf16.mxu0 0
    %217 = vmatpush1.bf16.xpose.msra.mxu0 0
    %218 = vmatprep.subr.bf16.mxu0 0
    %219 = vmatpush1.bf16.xpose.msra.mxu0 0
    %220 = vmatprep.subr.bf16.mxu0 0
    %221 = vmatpush1.bf16.xpose.msra.mxu0 0
    %222 = vmatprep.subr.bf16.mxu0 0
    %223 = vmatpush1.bf16.xpose.msra.mxu0 0
    %224 = vmatprep.subr.bf16.mxu0 0
    %225 = vmatpush1.bf16.xpose.msra.mxu0 0
    %226 = vmatprep.mubr.bf16.mxu0 0
    %227 = vmatmul.mubr.bf16.gmra.mrb[0].mxu0 %v189
    %v228 = vpop.f32.mrb[0].mxu0
    %v229 = vadd.f32 %v106, %v228
    %v230 = vpop.f32.mrb[0].mxu0
    %v231 = vpop.f32.mrb[0].mxu0
    %v232 = vadd.f32 %v107, %v231
    %v233 = vpop.f32.mrb[0].mxu0
    %234 = vdwg.mxu0
    %235 = vrot.lane.b32.xlu0 %v180, 96
    %v236 = vpop.permute.xlu0 %235
    %v238 = vsel %vm187, %v180, 0
    %v241 = vsel %vm187, %v236, 0
    %243 = vmatprep.subr.bf16.mxu0 0
    %244 = vmatpush1.bf16.xpose.msra.mxu0 %v241
    %245 = vmatprep.subr.bf16.mxu0 0
    %246 = vmatpush1.bf16.xpose.msra.mxu0 0
    %247 = vmatprep.subr.bf16.mxu0 0
    %248 = vmatpush1.bf16.xpose.msra.mxu0 0
    %249 = vmatprep.subr.bf16.mxu0 0
    %250 = vmatpush1.bf16.xpose.msra.mxu0 0
    %251 = vmatprep.subr.bf16.mxu0 0
    %252 = vmatpush1.bf16.xpose.msra.mxu0 0
    %253 = vmatprep.subr.bf16.mxu0 0
    %254 = vmatpush1.bf16.xpose.msra.mxu0 0
    %255 = vmatprep.subr.bf16.mxu0 0
    %256 = vmatpush1.bf16.xpose.msra.mxu0 0
    %257 = vmatprep.subr.bf16.mxu0 0
    %258 = vmatpush1.bf16.xpose.msra.mxu0 0
    %259 = vmatprep.subr.bf16.mxu0 0
    %260 = vmatpush1.bf16.xpose.msra.mxu0 0
    %261 = vmatprep.subr.bf16.mxu0 0
    %262 = vmatpush1.bf16.xpose.msra.mxu0 0
    %263 = vmatprep.subr.bf16.mxu0 0
    %264 = vmatpush1.bf16.xpose.msra.mxu0 0
    %265 = vmatprep.subr.bf16.mxu0 0
    %266 = vmatpush1.bf16.xpose.msra.mxu0 0
    %267 = vmatprep.subr.bf16.mxu0 0
    %268 = vmatpush1.bf16.xpose.msra.mxu0 0
    %269 = vmatprep.subr.bf16.mxu0 0
    %270 = vmatpush1.bf16.xpose.msra.mxu0 0
    %271 = vmatprep.subr.bf16.mxu0 0
    %272 = vmatpush1.bf16.xpose.msra.mxu0 0
    %273 = vmatprep.subr.bf16.mxu0 0
    %274 = vmatpush1.bf16.xpose.msra.mxu0 0
    %275 = vmatprep.mubr.bf16.mxu0 0
    %276 = vmatmul.mubr.bf16.gmra.mrb[0].mxu0 %v238
    %v277 = vpop.f32.mrb[0].mxu0
    %v278 = vadd.f32 %v106, %v277
    %v279 = vpop.f32.mrb[0].mxu0
    %v280 = vpop.f32.mrb[0].mxu0
    %v281 = vadd.f32 %v107, %v280
    %v282 = vpop.f32.mrb[0].mxu0
    %283 = vdwg.mxu0
    %284 = vrot.lane.b32.xlu0 %v182, 96
    %v285 = vpop.permute.xlu0 %284
    %v287 = vsel %vm187, %v182, 0
    %v290 = vsel %vm187, %v285, 0
    %292 = vmatprep.subr.bf16.mxu0 0
    %293 = vmatpush1.bf16.xpose.msra.mxu0 %v290
    %294 = vmatprep.subr.bf16.mxu0 0
    %295 = vmatpush1.bf16.xpose.msra.mxu0 0
    %296 = vmatprep.subr.bf16.mxu0 0
    %297 = vmatpush1.bf16.xpose.msra.mxu0 0
    %298 = vmatprep.subr.bf16.mxu0 0
    %299 = vmatpush1.bf16.xpose.msra.mxu0 0
    %300 = vmatprep.subr.bf16.mxu0 0
    %301 = vmatpush1.bf16.xpose.msra.mxu0 0
    %302 = vmatprep.subr.bf16.mxu0 0
    %303 = vmatpush1.bf16.xpose.msra.mxu0 0
    %304 = vmatprep.subr.bf16.mxu0 0
    %305 = vmatpush1.bf16.xpose.msra.mxu0 0
    %306 = vmatprep.subr.bf16.mxu0 0
    %307 = vmatpush1.bf16.xpose.msra.mxu0 0
    %308 = vmatprep.subr.bf16.mxu0 0
    %309 = vmatpush1.bf16.xpose.msra.mxu0 0
    %310 = vmatprep.subr.bf16.mxu0 0
    %311 = vmatpush1.bf16.xpose.msra.mxu0 0
    %312 = vmatprep.subr.bf16.mxu0 0
    %313 = vmatpush1.bf16.xpose.msra.mxu0 0
    %314 = vmatprep.subr.bf16.mxu0 0
    %315 = vmatpush1.bf16.xpose.msra.mxu0 0
    %316 = vmatprep.subr.bf16.mxu0 0
    %317 = vmatpush1.bf16.xpose.msra.mxu0 0
    %318 = vmatprep.subr.bf16.mxu0 0
    %319 = vmatpush1.bf16.xpose.msra.mxu0 0
    %320 = vmatprep.subr.bf16.mxu0 0
    %321 = vmatpush1.bf16.xpose.msra.mxu0 0
    %322 = vmatprep.subr.bf16.mxu0 0
    %323 = vmatpush1.bf16.xpose.msra.mxu0 0
    %324 = vmatprep.mubr.bf16.mxu0 0
    %325 = vmatmul.mubr.bf16.gmra.mrb[0].mxu0 %v287
    %v326 = vpop.f32.mrb[0].mxu0
    %v327 = vadd.f32 %v106, %v326
    %v328 = vpop.f32.mrb[0].mxu0
    %v329 = vpop.f32.mrb[0].mxu0
    %v330 = vadd.f32 %v107, %v329
    %v331 = vpop.f32.mrb[0].mxu0
    %332 = vdwg.mxu0
    %333 = vrot.lane.b32.xlu0 %v184, 96
    %v334 = vpop.permute.xlu0 %333
    %v336 = vsel %vm187, %v184, 0
    %v339 = vsel %vm187, %v334, 0
    %341 = vmatprep.subr.bf16.mxu0 0
    %342 = vmatpush1.bf16.xpose.msra.mxu0 %v339
    %343 = vmatprep.subr.bf16.mxu0 0
    %344 = vmatpush1.bf16.xpose.msra.mxu0 0
    %345 = vmatprep.subr.bf16.mxu0 0
    %346 = vmatpush1.bf16.xpose.msra.mxu0 0
    %347 = vmatprep.subr.bf16.mxu0 0
    %348 = vmatpush1.bf16.xpose.msra.mxu0 0
    %349 = vmatprep.subr.bf16.mxu0 0
    %350 = vmatpush1.bf16.xpose.msra.mxu0 0
    %351 = vmatprep.subr.bf16.mxu0 0
    %352 = vmatpush1.bf16.xpose.msra.mxu0 0
    %353 = vmatprep.subr.bf16.mxu0 0
    %354 = vmatpush1.bf16.xpose.msra.mxu0 0
    %355 = vmatprep.subr.bf16.mxu0 0
    %356 = vmatpush1.bf16.xpose.msra.mxu0 0
    %357 = vmatprep.subr.bf16.mxu0 0
    %358 = vmatpush1.bf16.xpose.msra.mxu0 0
    %359 = vmatprep.subr.bf16.mxu0 0
    %360 = vmatpush1.bf16.xpose.msra.mxu0 0
    %361 = vmatprep.subr.bf16.mxu0 0
    %362 = vmatpush1.bf16.xpose.msra.mxu0 0
    %363 = vmatprep.subr.bf16.mxu0 0
    %364 = vmatpush1.bf16.xpose.msra.mxu0 0
    %365 = vmatprep.subr.bf16.mxu0 0
    %366 = vmatpush1.bf16.xpose.msra.mxu0 0
    %367 = vmatprep.subr.bf16.mxu0 0
    %368 = vmatpush1.bf16.xpose.msra.mxu0 0
    %369 = vmatprep.subr.bf16.mxu0 0
    %370 = vmatpush1.bf16.xpose.msra.mxu0 0
    %371 = vmatprep.subr.bf16.mxu0 0
    %372 = vmatpush1.bf16.xpose.msra.mxu0 0
    %373 = vmatprep.mubr.bf16.mxu0 0
    %374 = vmatmul.mubr.bf16.gmra.mrb[0].mxu0 %v336
    %v375 = vpop.f32.mrb[0].mxu0
    %v376 = vadd.f32 %v106, %v375
    %v377 = vpop.f32.mrb[0].mxu0
    %v378 = vpop.f32.mrb[0].mxu0
    %v379 = vadd.f32 %v107, %v378
    %v380 = vpop.f32.mrb[0].mxu0
    %381 = vdwg.mxu0
    %vm382 = vcmask 130048
    %v383 = vsel %vm382, %v229, -inf
    %384 = vmax.xlane.f32.xlu0 %v383
    %v385 = vpop.xlane.xlu0 %384
    %v386 = vsel %vm382, %v232, -inf
    %387 = vmax.xlane.f32.xlu0 %v386
    %v388 = vpop.xlane.xlu0 %387
    %v389 = vsel %vm382, %v278, -inf
    %390 = vmax.xlane.f32.xlu0 %v389
    %v391 = vpop.xlane.xlu0 %390
    %v392 = vsel %vm382, %v281, -inf
    %393 = vmax.xlane.f32.xlu0 %v392
    %v394 = vpop.xlane.xlu0 %393
    %v395 = vsel %vm382, %v327, -inf
    %396 = vmax.xlane.f32.xlu0 %v395
    %v397 = vpop.xlane.xlu0 %396
    %v398 = vsel %vm382, %v330, -inf
    %399 = vmax.xlane.f32.xlu0 %v398
    %v400 = vpop.xlane.xlu0 %399
    %v401 = vsel %vm382, %v376, -inf
    %402 = vmax.xlane.f32.xlu0 %v401
    %v403 = vpop.xlane.xlu0 %402
    %v404 = vsel %vm382, %v379, -inf
    %405 = vmax.xlane.f32.xlu0 %v404
    %v406 = vpop.xlane.xlu0 %405
    %v407 = vsub.f32 %v229, %v385
    %v408 = vsub.f32 %v232, %v388
    %v409 = vsub.f32 %v278, %v391
    %v410 = vsub.f32 %v281, %v394
    %v411 = vsub.f32 %v327, %v397
    %v412 = vsub.f32 %v330, %v400
    %v413 = vsub.f32 %v376, %v403
    %v414 = vsub.f32 %v379, %v406
    %v415 = vmul.f32 %v407, 1.442695
    %v416 = vpow.pop %v415
    %v417 = vmul.f32 %v408, 1.442695
    %v418 = vpow.pop %v417
    %v419 = vmul.f32 %v409, 1.442695
    %v420 = vpow.pop %v419
    %v421 = vmul.f32 %v410, 1.442695
    %v422 = vpow.pop %v421
    %v423 = vmul.f32 %v411, 1.442695
    %v424 = vpow.pop %v423
    %v425 = vmul.f32 %v412, 1.442695
    %v426 = vpow.pop %v425
    %v427 = vmul.f32 %v413, 1.442695
    %v428 = vpow.pop %v427
    %v429 = vmul.f32 %v414, 1.442695
    %v430 = vpow.pop %v429
    %v431 = vsel %vm382, %v416, 0.0
    %432 = vadd.xlane.f32.xlu0 %v431
    %v433 = vpop.xlane.xlu0 %432
    %v434 = vsel %vm382, %v418, 0.0
    %435 = vadd.xlane.f32.xlu0 %v434
    %v436 = vpop.xlane.xlu0 %435
    %v437 = vsel %vm382, %v420, 0.0
    %438 = vadd.xlane.f32.xlu0 %v437
    %v439 = vpop.xlane.xlu0 %438
    %v440 = vsel %vm382, %v422, 0.0
    %441 = vadd.xlane.f32.xlu0 %v440
    %v442 = vpop.xlane.xlu0 %441
    %v443 = vsel %vm382, %v424, 0.0
    %444 = vadd.xlane.f32.xlu0 %v443
    %v445 = vpop.xlane.xlu0 %444
    %v446 = vsel %vm382, %v426, 0.0
    %447 = vadd.xlane.f32.xlu0 %v446
    %v448 = vpop.xlane.xlu0 %447
    %v449 = vsel %vm382, %v428, 0.0
    %450 = vadd.xlane.f32.xlu0 %v449
    %v451 = vpop.xlane.xlu0 %450
    %v452 = vsel %vm382, %v430, 0.0
    %453 = vadd.xlane.f32.xlu0 %v452
    %v454 = vpop.xlane.xlu0 %453
    %v455 = vrcp.pop %v433
    %v456 = vrcp.pop %v436
    %v457 = vrcp.pop %v439
    %v458 = vrcp.pop %v442
    %v459 = vrcp.pop %v445
    %v460 = vrcp.pop %v448
    %v461 = vrcp.pop %v451
    %v462 = vrcp.pop %v454
    %v463 = vmul.f32 %v416, %v455
    %v464 = vmul.f32 %v418, %v456
    %v465 = vmul.f32 %v420, %v457
    %v466 = vmul.f32 %v422, %v458
    %v467 = vmul.f32 %v424, %v459
    %v468 = vmul.f32 %v426, %v460
    %v469 = vmul.f32 %v428, %v461
    %v470 = vmul.f32 %v430, %v462
    %v471 = vpack.c.bf16 %v464, %v463
    %v472 = vpack.c.bf16 %v466, %v465
    %v473 = vpack.c.bf16 %v468, %v467
    %v474 = vpack.c.bf16 %v470, %v469
    %475 = vrot.lane.b32.xlu0 %v177, 64
    %v476 = vpop.permute.xlu0 %475
    %v479 = vsel %vm382, %v471, 0
    %481 = vmatprep.subr.bf16.mxu0 0
    %482 = vmatpush1.bf16.msra.mxu0 %v476
    %483 = vmatprep.subr.bf16.mxu0 0
    %484 = vmatpush1.bf16.msra.mxu0 0
    %485 = vmatprep.subr.bf16.mxu0 0
    %486 = vmatpush1.bf16.msra.mxu0 0
    %487 = vmatprep.subr.bf16.mxu0 0
    %488 = vmatpush1.bf16.msra.mxu0 0
    %489 = vmatprep.subr.bf16.mxu0 0
    %490 = vmatpush1.bf16.msra.mxu0 0
    %491 = vmatprep.subr.bf16.mxu0 0
    %492 = vmatpush1.bf16.msra.mxu0 0
    %493 = vmatprep.subr.bf16.mxu0 0
    %494 = vmatpush1.bf16.msra.mxu0 0
    %495 = vmatprep.subr.bf16.mxu0 0
    %496 = vmatpush1.bf16.msra.mxu0 0
    %497 = vmatprep.subr.bf16.mxu0 0
    %498 = vmatpush1.bf16.msra.mxu0 0
    %499 = vmatprep.subr.bf16.mxu0 0
    %500 = vmatpush1.bf16.msra.mxu0 0
    %501 = vmatprep.subr.bf16.mxu0 0
    %502 = vmatpush1.bf16.msra.mxu0 0
    %503 = vmatprep.subr.bf16.mxu0 0
    %504 = vmatpush1.bf16.msra.mxu0 0
    %505 = vmatprep.subr.bf16.mxu0 0
    %506 = vmatpush1.bf16.msra.mxu0 0
    %507 = vmatprep.subr.bf16.mxu0 0
    %508 = vmatpush1.bf16.msra.mxu0 0
    %509 = vmatprep.subr.bf16.mxu0 0
    %510 = vmatpush1.bf16.msra.mxu0 0
    %511 = vmatprep.subr.bf16.mxu0 0
    %512 = vmatpush1.bf16.msra.mxu0 0
    %513 = vmatprep.mubr.bf16.mxu0 0
    %514 = vmatmul.mubr.bf16.gmra.mrb[0].mxu0 %v479
    %v515 = vpop.f32.mrb[0].mxu0
    %v516 = vadd.f32 0.0, %v515
    %v517 = vpop.f32.mrb[0].mxu0
    %v518 = vpop.f32.mrb[0].mxu0
    %v519 = vadd.f32 0.0, %v518
    %v520 = vpop.f32.mrb[0].mxu0
    %521 = vdwg.mxu0
    %522 = vrot.lane.b32.xlu0 %v180, 64
    %v523 = vpop.permute.xlu0 %522
    %v526 = vsel %vm382, %v472, 0
    %528 = vmatprep.subr.bf16.mxu0 0
    %529 = vmatpush1.bf16.msra.mxu0 %v523
    %530 = vmatprep.subr.bf16.mxu0 0
    %531 = vmatpush1.bf16.msra.mxu0 0
    %532 = vmatprep.subr.bf16.mxu0 0
    %533 = vmatpush1.bf16.msra.mxu0 0
    %534 = vmatprep.subr.bf16.mxu0 0
    %535 = vmatpush1.bf16.msra.mxu0 0
    %536 = vmatprep.subr.bf16.mxu0 0
    %537 = vmatpush1.bf16.msra.mxu0 0
    %538 = vmatprep.subr.bf16.mxu0 0
    %539 = vmatpush1.bf16.msra.mxu0 0
    %540 = vmatprep.subr.bf16.mxu0 0
    %541 = vmatpush1.bf16.msra.mxu0 0
    %542 = vmatprep.subr.bf16.mxu0 0
    %543 = vmatpush1.bf16.msra.mxu0 0
    %544 = vmatprep.subr.bf16.mxu0 0
    %545 = vmatpush1.bf16.msra.mxu0 0
    %546 = vmatprep.subr.bf16.mxu0 0
    %547 = vmatpush1.bf16.msra.mxu0 0
    %548 = vmatprep.subr.bf16.mxu0 0
    %549 = vmatpush1.bf16.msra.mxu0 0
    %550 = vmatprep.subr.bf16.mxu0 0
    %551 = vmatpush1.bf16.msra.mxu0 0
    %552 = vmatprep.subr.bf16.mxu0 0
    %553 = vmatpush1.bf16.msra.mxu0 0
    %554 = vmatprep.subr.bf16.mxu0 0
    %555 = vmatpush1.bf16.msra.mxu0 0
    %556 = vmatprep.subr.bf16.mxu0 0
    %557 = vmatpush1.bf16.msra.mxu0 0
    %558 = vmatprep.subr.bf16.mxu0 0
    %559 = vmatpush1.bf16.msra.mxu0 0
    %560 = vmatprep.mubr.bf16.mxu0 0
    %561 = vmatmul.mubr.bf16.gmra.mrb[0].mxu0 %v526
    %v562 = vpop.f32.mrb[0].mxu0
    %v563 = vadd.f32 0.0, %v562
    %v564 = vpop.f32.mrb[0].mxu0
    %v565 = vpop.f32.mrb[0].mxu0
    %v566 = vadd.f32 0.0, %v565
    %v567 = vpop.f32.mrb[0].mxu0
    %568 = vdwg.mxu0
    %569 = vrot.lane.b32.xlu0 %v182, 64
    %v570 = vpop.permute.xlu0 %569
    %v573 = vsel %vm382, %v473, 0
    %575 = vmatprep.subr.bf16.mxu0 0
    %576 = vmatpush1.bf16.msra.mxu0 %v570
    %577 = vmatprep.subr.bf16.mxu0 0
    %578 = vmatpush1.bf16.msra.mxu0 0
    %579 = vmatprep.subr.bf16.mxu0 0
    %580 = vmatpush1.bf16.msra.mxu0 0
    %581 = vmatprep.subr.bf16.mxu0 0
    %582 = vmatpush1.bf16.msra.mxu0 0
    %583 = vmatprep.subr.bf16.mxu0 0
    %584 = vmatpush1.bf16.msra.mxu0 0
    %585 = vmatprep.subr.bf16.mxu0 0
    %586 = vmatpush1.bf16.msra.mxu0 0
    %587 = vmatprep.subr.bf16.mxu0 0
    %588 = vmatpush1.bf16.msra.mxu0 0
    %589 = vmatprep.subr.bf16.mxu0 0
    %590 = vmatpush1.bf16.msra.mxu0 0
    %591 = vmatprep.subr.bf16.mxu0 0
    %592 = vmatpush1.bf16.msra.mxu0 0
    %593 = vmatprep.subr.bf16.mxu0 0
    %594 = vmatpush1.bf16.msra.mxu0 0
    %595 = vmatprep.subr.bf16.mxu0 0
    %596 = vmatpush1.bf16.msra.mxu0 0
    %597 = vmatprep.subr.bf16.mxu0 0
    %598 = vmatpush1.bf16.msra.mxu0 0
    %599 = vmatprep.subr.bf16.mxu0 0
    %600 = vmatpush1.bf16.msra.mxu0 0
    %601 = vmatprep.subr.bf16.mxu0 0
    %602 = vmatpush1.bf16.msra.mxu0 0
    %603 = vmatprep.subr.bf16.mxu0 0
    %604 = vmatpush1.bf16.msra.mxu0 0
    %605 = vmatprep.subr.bf16.mxu0 0
    %606 = vmatpush1.bf16.msra.mxu0 0
    %607 = vmatprep.mubr.bf16.mxu0 0
    %608 = vmatmul.mubr.bf16.gmra.mrb[0].mxu0 %v573
    %v609 = vpop.f32.mrb[0].mxu0
    %v610 = vadd.f32 0.0, %v609
    %v611 = vpop.f32.mrb[0].mxu0
    %v612 = vpop.f32.mrb[0].mxu0
    %v613 = vadd.f32 0.0, %v612
    %v614 = vpop.f32.mrb[0].mxu0
    %615 = vdwg.mxu0
    %616 = vrot.lane.b32.xlu0 %v184, 64
    %v617 = vpop.permute.xlu0 %616
    %v620 = vsel %vm382, %v474, 0
    %622 = vmatprep.subr.bf16.mxu0 0
    %623 = vmatpush1.bf16.msra.mxu0 %v617
    %624 = vmatprep.subr.bf16.mxu0 0
    %625 = vmatpush1.bf16.msra.mxu0 0
    %626 = vmatprep.subr.bf16.mxu0 0
    %627 = vmatpush1.bf16.msra.mxu0 0
    %628 = vmatprep.subr.bf16.mxu0 0
    %629 = vmatpush1.bf16.msra.mxu0 0
    %630 = vmatprep.subr.bf16.mxu0 0
    %631 = vmatpush1.bf16.msra.mxu0 0
    %632 = vmatprep.subr.bf16.mxu0 0
    %633 = vmatpush1.bf16.msra.mxu0 0
    %634 = vmatprep.subr.bf16.mxu0 0
    %635 = vmatpush1.bf16.msra.mxu0 0
    %636 = vmatprep.subr.bf16.mxu0 0
    %637 = vmatpush1.bf16.msra.mxu0 0
    %638 = vmatprep.subr.bf16.mxu0 0
    %639 = vmatpush1.bf16.msra.mxu0 0
    %640 = vmatprep.subr.bf16.mxu0 0
    %641 = vmatpush1.bf16.msra.mxu0 0
    %642 = vmatprep.subr.bf16.mxu0 0
    %643 = vmatpush1.bf16.msra.mxu0 0
    %644 = vmatprep.subr.bf16.mxu0 0
    %645 = vmatpush1.bf16.msra.mxu0 0
    %646 = vmatprep.subr.bf16.mxu0 0
    %647 = vmatpush1.bf16.msra.mxu0 0
    %648 = vmatprep.subr.bf16.mxu0 0
    %649 = vmatpush1.bf16.msra.mxu0 0
    %650 = vmatprep.subr.bf16.mxu0 0
    %651 = vmatpush1.bf16.msra.mxu0 0
    %652 = vmatprep.subr.bf16.mxu0 0
    %653 = vmatpush1.bf16.msra.mxu0 0
    %654 = vmatprep.mubr.bf16.mxu0 0
    %655 = vmatmul.mubr.bf16.gmra.mrb[0].mxu0 %v620
    %v656 = vpop.f32.mrb[0].mxu0
    %v657 = vadd.f32 0.0, %v656
    %v658 = vpop.f32.mrb[0].mxu0
    %v659 = vpop.f32.mrb[0].mxu0
    %v660 = vadd.f32 0.0, %v659
    %v661 = vpop.f32.mrb[0].mxu0
    %662 = vdwg.mxu0
    %v663 = vpack.c.bf16 %v519, %v516
    %v664 = vpack.c.bf16 %v566, %v563
    %v665 = vpack.c.bf16 %v613, %v610
    %v666 = vpack.c.bf16 %v660, %v657
    %v667 = vld [vmem:[%s7] sm:$0xf]
    %v668 = vld [vmem:[%s7 + $0x4] sm:$0xf]
    %v669 = vld [vmem:[%s7 + $0x8] sm:$0xf]
    %v670 = vld [vmem:[%s7 + $0xc] sm:$0xf]
    %v672 = vsel %vm187, %v663, 0
    %vm674 = vcmask 1043456
    %v676 = vsel %vm674, %v667, 0
    %678 = vmatprep.subr.bf16.mxu0 0
    %679 = vmatpush1.bf16.msra.mxu0 %v676
    %680 = vmatprep.subr.bf16.mxu0 0
    %681 = vmatpush1.bf16.msra.mxu0 0
    %682 = vmatprep.subr.bf16.mxu0 0
    %683 = vmatpush1.bf16.msra.mxu0 0
    %684 = vmatprep.subr.bf16.mxu0 0
    %685 = vmatpush1.bf16.msra.mxu0 0
    %686 = vmatprep.subr.bf16.mxu0 0
    %687 = vmatpush1.bf16.msra.mxu0 0
    %688 = vmatprep.subr.bf16.mxu0 0
    %689 = vmatpush1.bf16.msra.mxu0 0
    %690 = vmatprep.subr.bf16.mxu0 0
    %691 = vmatpush1.bf16.msra.mxu0 0
    %692 = vmatprep.subr.bf16.mxu0 0
    %693 = vmatpush1.bf16.msra.mxu0 0
    %694 = vmatprep.subr.bf16.mxu0 0
    %695 = vmatpush1.bf16.msra.mxu0 0
    %696 = vmatprep.subr.bf16.mxu0 0
    %697 = vmatpush1.bf16.msra.mxu0 0
    %698 = vmatprep.subr.bf16.mxu0 0
    %699 = vmatpush1.bf16.msra.mxu0 0
    %700 = vmatprep.subr.bf16.mxu0 0
    %701 = vmatpush1.bf16.msra.mxu0 0
    %702 = vmatprep.subr.bf16.mxu0 0
    %703 = vmatpush1.bf16.msra.mxu0 0
    %704 = vmatprep.subr.bf16.mxu0 0
    %705 = vmatpush1.bf16.msra.mxu0 0
    %706 = vmatprep.subr.bf16.mxu0 0
    %707 = vmatpush1.bf16.msra.mxu0 0
    %708 = vmatprep.subr.bf16.mxu0 0
    %709 = vmatpush1.bf16.msra.mxu0 0
    %710 = vmatprep.mubr.bf16.mxu0 0
    %711 = vmatmul.mubr.bf16.gmra.mrb[0].mxu0 %v672
    %v712 = vpop.f32.mrb[0].mxu0
    %v713 = vadd.f32 0.0, %v712
    %v714 = vpop.f32.mrb[0].mxu0
    %v715 = vpop.f32.mrb[0].mxu0
    %v716 = vadd.f32 0.0, %v715
    %v717 = vpop.f32.mrb[0].mxu0
    %718 = vdwg.mxu0
    %v720 = vsel %vm187, %v664, 0
    %v723 = vsel %vm674, %v668, 0
    %725 = vmatprep.subr.bf16.mxu0 0
    %726 = vmatpush1.bf16.msra.mxu0 %v723
    %727 = vmatprep.subr.bf16.mxu0 0
    %728 = vmatpush1.bf16.msra.mxu0 0
    %729 = vmatprep.subr.bf16.mxu0 0
    %730 = vmatpush1.bf16.msra.mxu0 0
    %731 = vmatprep.subr.bf16.mxu0 0
    %732 = vmatpush1.bf16.msra.mxu0 0
    %733 = vmatprep.subr.bf16.mxu0 0
    %734 = vmatpush1.bf16.msra.mxu0 0
    %735 = vmatprep.subr.bf16.mxu0 0
    %736 = vmatpush1.bf16.msra.mxu0 0
    %737 = vmatprep.subr.bf16.mxu0 0
    %738 = vmatpush1.bf16.msra.mxu0 0
    %739 = vmatprep.subr.bf16.mxu0 0
    %740 = vmatpush1.bf16.msra.mxu0 0
    %741 = vmatprep.subr.bf16.mxu0 0
    %742 = vmatpush1.bf16.msra.mxu0 0
    %743 = vmatprep.subr.bf16.mxu0 0
    %744 = vmatpush1.bf16.msra.mxu0 0
    %745 = vmatprep.subr.bf16.mxu0 0
    %746 = vmatpush1.bf16.msra.mxu0 0
    %747 = vmatprep.subr.bf16.mxu0 0
    %748 = vmatpush1.bf16.msra.mxu0 0
    %749 = vmatprep.subr.bf16.mxu0 0
    %750 = vmatpush1.bf16.msra.mxu0 0
    %751 = vmatprep.subr.bf16.mxu0 0
    %752 = vmatpush1.bf16.msra.mxu0 0
    %753 = vmatprep.subr.bf16.mxu0 0
    %754 = vmatpush1.bf16.msra.mxu0 0
    %755 = vmatprep.subr.bf16.mxu0 0
    %756 = vmatpush1.bf16.msra.mxu0 0
    %757 = vmatprep.mubr.bf16.mxu0 0
    %758 = vmatmul.mubr.bf16.gmra.mrb[0].mxu0 %v720
    %v759 = vpop.f32.mrb[0].mxu0
    %v760 = vadd.f32 0.0, %v759
    %v761 = vpop.f32.mrb[0].mxu0
    %v762 = vpop.f32.mrb[0].mxu0
    %v763 = vadd.f32 0.0, %v762
    %v764 = vpop.f32.mrb[0].mxu0
    %765 = vdwg.mxu0
    %v767 = vsel %vm187, %v665, 0
    %v770 = vsel %vm674, %v669, 0
    %772 = vmatprep.subr.bf16.mxu0 0
    %773 = vmatpush1.bf16.msra.mxu0 %v770
    %774 = vmatprep.subr.bf16.mxu0 0
    %775 = vmatpush1.bf16.msra.mxu0 0
    %776 = vmatprep.subr.bf16.mxu0 0
    %777 = vmatpush1.bf16.msra.mxu0 0
    %778 = vmatprep.subr.bf16.mxu0 0
    %779 = vmatpush1.bf16.msra.mxu0 0
    %780 = vmatprep.subr.bf16.mxu0 0
    %781 = vmatpush1.bf16.msra.mxu0 0
    %782 = vmatprep.subr.bf16.mxu0 0
    %783 = vmatpush1.bf16.msra.mxu0 0
    %784 = vmatprep.subr.bf16.mxu0 0
    %785 = vmatpush1.bf16.msra.mxu0 0
    %786 = vmatprep.subr.bf16.mxu0 0
    %787 = vmatpush1.bf16.msra.mxu0 0
    %788 = vmatprep.subr.bf16.mxu0 0
    %789 = vmatpush1.bf16.msra.mxu0 0
    %790 = vmatprep.subr.bf16.mxu0 0
    %791 = vmatpush1.bf16.msra.mxu0 0
    %792 = vmatprep.subr.bf16.mxu0 0
    %793 = vmatpush1.bf16.msra.mxu0 0
    %794 = vmatprep.subr.bf16.mxu0 0
    %795 = vmatpush1.bf16.msra.mxu0 0
    %796 = vmatprep.subr.bf16.mxu0 0
    %797 = vmatpush1.bf16.msra.mxu0 0
    %798 = vmatprep.subr.bf16.mxu0 0
    %799 = vmatpush1.bf16.msra.mxu0 0
    %800 = vmatprep.subr.bf16.mxu0 0
    %801 = vmatpush1.bf16.msra.mxu0 0
    %802 = vmatprep.subr.bf16.mxu0 0
    %803 = vmatpush1.bf16.msra.mxu0 0
    %804 = vmatprep.mubr.bf16.mxu0 0
    %805 = vmatmul.mubr.bf16.gmra.mrb[0].mxu0 %v767
    %v806 = vpop.f32.mrb[0].mxu0
    %v807 = vadd.f32 0.0, %v806
    %v808 = vpop.f32.mrb[0].mxu0
    %v809 = vpop.f32.mrb[0].mxu0
    %v810 = vadd.f32 0.0, %v809
    %v811 = vpop.f32.mrb[0].mxu0
    %812 = vdwg.mxu0
    %v814 = vsel %vm187, %v666, 0
    %v817 = vsel %vm674, %v670, 0
    %819 = vmatprep.subr.bf16.mxu0 0
    %820 = vmatpush1.bf16.msra.mxu0 %v817
    %821 = vmatprep.subr.bf16.mxu0 0
    %822 = vmatpush1.bf16.msra.mxu0 0
    %823 = vmatprep.subr.bf16.mxu0 0
    %824 = vmatpush1.bf16.msra.mxu0 0
    %825 = vmatprep.subr.bf16.mxu0 0
    %826 = vmatpush1.bf16.msra.mxu0 0
    %827 = vmatprep.subr.bf16.mxu0 0
    %828 = vmatpush1.bf16.msra.mxu0 0
    %829 = vmatprep.subr.bf16.mxu0 0
    %830 = vmatpush1.bf16.msra.mxu0 0
    %831 = vmatprep.subr.bf16.mxu0 0
    %832 = vmatpush1.bf16.msra.mxu0 0
    %833 = vmatprep.subr.bf16.mxu0 0
    %834 = vmatpush1.bf16.msra.mxu0 0
    %835 = vmatprep.subr.bf16.mxu0 0
    %836 = vmatpush1.bf16.msra.mxu0 0
    %837 = vmatprep.subr.bf16.mxu0 0
    %838 = vmatpush1.bf16.msra.mxu0 0
    %839 = vmatprep.subr.bf16.mxu0 0
    %840 = vmatpush1.bf16.msra.mxu0 0
    %841 = vmatprep.subr.bf16.mxu0 0
    %842 = vmatpush1.bf16.msra.mxu0 0
    %843 = vmatprep.subr.bf16.mxu0 0
    %844 = vmatpush1.bf16.msra.mxu0 0
    %845 = vmatprep.subr.bf16.mxu0 0
    %846 = vmatpush1.bf16.msra.mxu0 0
    %847 = vmatprep.subr.bf16.mxu0 0
    %848 = vmatpush1.bf16.msra.mxu0 0
    %849 = vmatprep.subr.bf16.mxu0 0
    %850 = vmatpush1.bf16.msra.mxu0 0
    %851 = vmatprep.mubr.bf16.mxu0 0
    %852 = vmatmul.mubr.bf16.gmra.mrb[0].mxu0 %v814
    %v853 = vpop.f32.mrb[0].mxu0
    %v854 = vadd.f32 0.0, %v853
    %v855 = vpop.f32.mrb[0].mxu0
    %v856 = vpop.f32.mrb[0].mxu0
    %v857 = vadd.f32 0.0, %v856
    %v858 = vpop.f32.mrb[0].mxu0
    %859 = vdwg.mxu0
    %v860 = vsel %vm62, %v713, 0.0
    %v861 = vsel %vm62, %v760, 0.0
    %v862 = vadd.f32 %v860, %v861
    %v863 = vsel %vm62, %v807, 0.0
    %v864 = vadd.f32 %v862, %v863
    %v865 = vsel %vm62, %v854, 0.0
    %v866 = vadd.f32 %v864, %v865
    %v867 = vsel %vm62, %v716, 0.0
    %v868 = vsel %vm62, %v763, 0.0
    %v869 = vadd.f32 %v867, %v868
    %v870 = vsel %vm62, %v810, 0.0
    %v871 = vadd.f32 %v869, %v870
    %v872 = vsel %vm62, %v857, 0.0
    %v873 = vadd.f32 %v871, %v872
    %v874 = vld [vmem:[%s8] sm:$0x1]
    %v876 = vlaneseq
    %v877 = vshrl.u32 %v876, 7
    %v878 = vsub.s32 0, %v877
    %v879 = vrot.slane %v874, %v878
    %v881 = vadd.f32 %v866, %v879
    %v882 = vadd.f32 %v873, %v879
    %v883 = vadd.f32 %v881, %v104
    %v884 = vadd.f32 %v882, %v105
    %v885 = vld [vmem:[%s9] sm:$0x1]
    %v886 = vld [vmem:[%s10] sm:$0x1]
    %v887 = vsel %vm62, %v883, 0.0
    %888 = vadd.xlane.f32.xlu0 %v887
    %v889 = vpop.xlane.xlu0 %888
    %v890 = vsel %vm62, %v884, 0.0
    %891 = vadd.xlane.f32.xlu0 %v890
    %v892 = vpop.xlane.xlu0 %891
    %v893 = vmul.f32 %v889, %v69
    %v894 = vmul.f32 %v892, %v69
    %v895 = vsub.f32 %v883, %v893
    %v896 = vsub.f32 %v884, %v894
    %v897 = vmul.f32 %v895, %v895
    %v898 = vmul.f32 %v896, %v896
    %v899 = vsel %vm62, %v897, 0.0
    %900 = vadd.xlane.f32.xlu0 %v899
    %v901 = vpop.xlane.xlu0 %900
    %v902 = vsel %vm62, %v898, 0.0
    %903 = vadd.xlane.f32.xlu0 %v902
    %v904 = vpop.xlane.xlu0 %903
    %v905 = vmul.f32 %v901, %v69
    %v906 = vmul.f32 %v904, %v69
    %v907 = vadd.f32 %v905, 1e-12
    %v908 = vadd.f32 %v906, 1e-12
    %v909 = vrsqrt.pop %v907
    %v910 = vrsqrt.pop %v908
    %v911 = vmul.f32 %v895, %v909
    %v912 = vmul.f32 %v896, %v910
    %v914 = vlaneseq
    %v915 = vshrl.u32 %v914, 7
    %v916 = vsub.s32 0, %v915
    %v917 = vrot.slane %v885, %v916
    %v919 = vmul.f32 %v911, %v917
    %v920 = vmul.f32 %v912, %v917
    %v922 = vlaneseq
    %v923 = vshrl.u32 %v922, 7
    %v924 = vsub.s32 0, %v923
    %v925 = vrot.slane %v886, %v924
    %v927 = vadd.f32 %v919, %v925
    %v928 = vadd.f32 %v920, %v925
    %v929 = vpack.c.bf16 %v928, %v927
    %v930 = vld [vmem:[%s11] sm:$0xf]
    %v931 = vld [vmem:[%s11 + $0x4] sm:$0xf]
    %v932 = vld [vmem:[%s11 + $0x8] sm:$0xf]
    %v933 = vld [vmem:[%s11 + $0xc] sm:$0xf]
    %v934 = vld [vmem:[%s12] sm:$0x1]
    %v936 = vlaneseq
    %v937 = vshrl.u32 %v936, 7
    %v938 = vsub.s32 0, %v937
    %v939 = vrot.slane %v934, %v938
    %v945 = vunpack.c.l.b16 %v930
    %v946 = vunpack.c.l.b16 %v931
    %v947 = vunpack.c.l.b16 %v932
    %v948 = vunpack.c.l.b16 %v933
    %v949 = vpack.c.b16 %v946, %v945
    %v950 = vpack.c.b16 %v948, %v947
    %v954 = vsel %vm62, %v929, 0
    %956 = vmatprep.subr.bf16.mxu0 0
    %957 = vmatpush1.bf16.msra.mxu0 %v949
    %958 = vmatprep.subr.bf16.mxu0 0
    %959 = vmatpush1.bf16.msra.mxu0 %v950
    %960 = vmatprep.subr.bf16.mxu0 0
    %961 = vmatpush1.bf16.msra.mxu0 0
    %962 = vmatprep.subr.bf16.mxu0 0
    %963 = vmatpush1.bf16.msra.mxu0 0
    %964 = vmatprep.subr.bf16.mxu0 0
    %965 = vmatpush1.bf16.msra.mxu0 0
    %966 = vmatprep.subr.bf16.mxu0 0
    %967 = vmatpush1.bf16.msra.mxu0 0
    %968 = vmatprep.subr.bf16.mxu0 0
    %969 = vmatpush1.bf16.msra.mxu0 0
    %970 = vmatprep.subr.bf16.mxu0 0
    %971 = vmatpush1.bf16.msra.mxu0 0
    %972 = vmatprep.subr.bf16.mxu0 0
    %973 = vmatpush1.bf16.msra.mxu0 0
    %974 = vmatprep.subr.bf16.mxu0 0
    %975 = vmatpush1.bf16.msra.mxu0 0
    %976 = vmatprep.subr.bf16.mxu0 0
    %977 = vmatpush1.bf16.msra.mxu0 0
    %978 = vmatprep.subr.bf16.mxu0 0
    %979 = vmatpush1.bf16.msra.mxu0 0
    %980 = vmatprep.subr.bf16.mxu0 0
    %981 = vmatpush1.bf16.msra.mxu0 0
    %982 = vmatprep.subr.bf16.mxu0 0
    %983 = vmatpush1.bf16.msra.mxu0 0
    %984 = vmatprep.subr.bf16.mxu0 0
    %985 = vmatpush1.bf16.msra.mxu0 0
    %986 = vmatprep.subr.bf16.mxu0 0
    %987 = vmatpush1.bf16.msra.mxu0 0
    %988 = vmatprep.mubr.bf16.mxu0 0
    %989 = vmatmul.mubr.bf16.gmra.mrb[0].mxu0 %v954
    %v990 = vpop.f32.mrb[0].mxu0
    %v991 = vadd.f32 %v939, %v990
    %v992 = vpop.f32.mrb[0].mxu0
    %v993 = vpop.f32.mrb[0].mxu0
    %v994 = vadd.f32 %v939, %v993
    %v995 = vpop.f32.mrb[0].mxu0
    %996 = vdwg.mxu0
    %v997 = vmul.f32 %v991, %v991
    %v998 = vmul.f32 %v994, %v994
    %v999 = vmul.f32 %v991, %v997
    %v1000 = vmul.f32 %v994, %v998
    %v1001 = vmul.f32 %v999, 0.044715
    %v1002 = vmul.f32 %v1000, 0.044715
    %v1003 = vadd.f32 %v991, %v1001
    %v1004 = vadd.f32 %v994, %v1002
    %v1005 = vmul.f32 %v1003, 0.7978846
    %v1006 = vmul.f32 %v1004, 0.7978846
    %v1007 = vtanh.pop %v1005
    %v1008 = vtanh.pop %v1006
    %v1009 = vadd.f32 %v1007, 1.0
    %v1010 = vadd.f32 %v1008, 1.0
    %v1011 = vmul.f32 %v1009, 0.5
    %v1012 = vmul.f32 %v1010, 0.5
    %v1013 = vmul.f32 %v991, %v1011
    %v1014 = vmul.f32 %v994, %v1012
    %v1015 = vpack.c.bf16 %v1014, %v1013
    %v1016 = vld [vmem:[%s13] sm:$0xf]
    %v1017 = vld [vmem:[%s13 + $0x4] sm:$0xf]
    %v1018 = vld [vmem:[%s13 + $0x8] sm:$0xf]
    %v1019 = vld [vmem:[%s13 + $0xc] sm:$0xf]
    %v1020 = vld [vmem:[%s13 + $0x10] sm:$0xf]
    %v1021 = vld [vmem:[%s13 + $0x14] sm:$0xf]
    %v1022 = vld [vmem:[%s13 + $0x18] sm:$0xf]
    %v1023 = vld [vmem:[%s13 + $0x1c] sm:$0xf]
    %v1024 = vld [vmem:[%s14] sm:$0x1]
    %v1026 = vlaneseq
    %v1027 = vshrl.u32 %v1026, 7
    %v1028 = vsub.s32 0, %v1027
    %v1029 = vrot.slane %v1024, %v1028
    %v1039 = vunpack.c.l.b16 %v1016
    %v1040 = vunpack.c.l.b16 %v1017
    %v1041 = vunpack.c.l.b16 %v1018
    %v1042 = vunpack.c.l.b16 %v1019
    %v1043 = vunpack.c.l.b16 %v1020
    %v1044 = vunpack.c.l.b16 %v1021
    %v1045 = vunpack.c.l.b16 %v1022
    %v1046 = vunpack.c.l.b16 %v1023
    %v1047 = vpack.c.b16 %v1040, %v1039
    %v1048 = vpack.c.b16 %v1042, %v1041
    %v1049 = vpack.c.b16 %v1044, %v1043
    %v1050 = vpack.c.b16 %v1046, %v1045
    %vm1055 = vcmask 523264
    %v1057 = vsel %vm1055, %v1015, 0
    %1059 = vmatprep.subr.bf16.mxu0 0
    %1060 = vmatpush1.bf16.msra.mxu0 %v1047
    %1061 = vmatprep.subr.bf16.mxu0 0
    %1062 = vmatpush1.bf16.msra.mxu0 %v1048
    %1063 = vmatprep.subr.bf16.mxu0 0
    %1064 = vmatpush1.bf16.msra.mxu0 %v1049
    %1065 = vmatprep.subr.bf16.mxu0 0
    %1066 = vmatpush1.bf16.msra.mxu0 %v1050
    %1067 = vmatprep.subr.bf16.mxu0 0
    %1068 = vmatpush1.bf16.msra.mxu0 0
    %1069 = vmatprep.subr.bf16.mxu0 0
    %1070 = vmatpush1.bf16.msra.mxu0 0
    %1071 = vmatprep.subr.bf16.mxu0 0
    %1072 = vmatpush1.bf16.msra.mxu0 0
    %1073 = vmatprep.subr.bf16.mxu0 0
    %1074 = vmatpush1.bf16.msra.mxu0 0
    %1075 = vmatprep.subr.bf16.mxu0 0
    %1076 = vmatpush1.bf16.msra.mxu0 0
    %1077 = vmatprep.subr.bf16.mxu0 0
    %1078 = vmatpush1.bf16.msra.mxu0 0
    %1079 = vmatprep.subr.bf16.mxu0 0
    %1080 = vmatpush1.bf16.msra.mxu0 0
    %1081 = vmatprep.subr.bf16.mxu0 0
    %1082 = vmatpush1.bf16.msra.mxu0 0
    %1083 = vmatprep.subr.bf16.mxu0 0
    %1084 = vmatpush1.bf16.msra.mxu0 0
    %1085 = vmatprep.subr.bf16.mxu0 0
    %1086 = vmatpush1.bf16.msra.mxu0 0
    %1087 = vmatprep.subr.bf16.mxu0 0
    %1088 = vmatpush1.bf16.msra.mxu0 0
    %1089 = vmatprep.subr.bf16.mxu0 0
    %1090 = vmatpush1.bf16.msra.mxu0 0
    %1091 = vmatprep.mubr.bf16.mxu0 0
    %1092 = vmatmul.mubr.bf16.gmra.mrb[0].mxu0 %v1057
    %v1093 = vpop.f32.mrb[0].mxu0
    %v1094 = vadd.f32 %v1029, %v1093
    %v1095 = vpop.f32.mrb[0].mxu0
    %v1096 = vpop.f32.mrb[0].mxu0
    %v1097 = vadd.f32 %v1029, %v1096
    %v1098 = vpop.f32.mrb[0].mxu0
    %1099 = vdwg.mxu0
    %v1100 = vadd.f32 %v1094, %v927
    %v1101 = vadd.f32 %v1097, %v928
    %v1102 = vld [vmem:[%s15] sm:$0x1]
    %v1103 = vld [vmem:[%s16] sm:$0x1]
    %v1104 = vsel %vm62, %v1100, 0.0
    %1105 = vadd.xlane.f32.xlu0 %v1104
    %v1106 = vpop.xlane.xlu0 %1105
    %v1107 = vsel %vm62, %v1101, 0.0
    %1108 = vadd.xlane.f32.xlu0 %v1107
    %v1109 = vpop.xlane.xlu0 %1108
    %v1110 = vmul.f32 %v1106, %v69
    %v1111 = vmul.f32 %v1109, %v69
    %v1112 = vsub.f32 %v1100, %v1110
    %v1113 = vsub.f32 %v1101, %v1111
    %v1114 = vmul.f32 %v1112, %v1112
    %v1115 = vmul.f32 %v1113, %v1113
    %v1116 = vsel %vm62, %v1114, 0.0
    %1117 = vadd.xlane.f32.xlu0 %v1116
    %v1118 = vpop.xlane.xlu0 %1117
    %v1119 = vsel %vm62, %v1115, 0.0
    %1120 = vadd.xlane.f32.xlu0 %v1119
    %v1121 = vpop.xlane.xlu0 %1120
    %v1122 = vmul.f32 %v1118, %v69
    %v1123 = vmul.f32 %v1121, %v69
    %v1124 = vadd.f32 %v1122, 1e-12
    %v1125 = vadd.f32 %v1123, 1e-12
    %v1126 = vrsqrt.pop %v1124
    %v1127 = vrsqrt.pop %v1125
    %v1128 = vmul.f32 %v1112, %v1126
    %v1129 = vmul.f32 %v1113, %v1127
    %v1131 = vlaneseq
    %v1132 = vshrl.u32 %v1131, 7
    %v1133 = vsub.s32 0, %v1132
    %v1134 = vrot.slane %v1102, %v1133
    %v1136 = vmul.f32 %v1128, %v1134
    %v1137 = vmul.f32 %v1129, %v1134
    %v1139 = vlaneseq
    %v1140 = vshrl.u32 %v1139, 7
    %v1141 = vsub.s32 0, %v1140
    %v1142 = vrot.slane %v1103, %v1141
    %v1144 = vadd.f32 %v1136, %v1142
    %v1145 = vadd.f32 %v1137, %v1142
    %v1146 = vpack.c.bf16 %v1145, %v1144
    %s1147 = scalar_lea.vmem %s5, 16
    %v1148 = vld [vmem:[%s1147] sm:$0xf]
    %v1149 = vld [vmem:[%s1147 + $0x4] sm:$0xf]
    %v1150 = vld [vmem:[%s1147 + $0x8] sm:$0xf]
    %v1151 = vld [vmem:[%s1147 + $0xc] sm:$0xf]
    %s1152 = scalar_lea.vmem %s6, 1
    %v1153 = vld [vmem:[%s1152] sm:$0x1]
    %v1155 = vlaneseq
    %v1156 = vshrl.u32 %v1155, 7
    %v1157 = vsub.s32 0, %v1156
    %v1158 = vrot.slane %v1153, %v1157
    %v1164 = vunpack.c.l.b16 %v1148
    %v1165 = vunpack.c.l.b16 %v1149
    %v1166 = vunpack.c.l.b16 %v1150
    %v1167 = vunpack.c.l.b16 %v1151
    %v1168 = vpack.c.b16 %v1165, %v1164
    %v1169 = vpack.c.b16 %v1167, %v1166
    %v1173 = vsel %vm62, %v1146, 0
    %1175 = vmatprep.subr.bf16.mxu0 0
    %1176 = vmatpush1.bf16.msra.mxu0 %v1168
    %1177 = vmatprep.subr.bf16.mxu0 0
    %1178 = vmatpush1.bf16.msra.mxu0 %v1169
    %1179 = vmatprep.subr.bf16.mxu0 0
    %1180 = vmatpush1.bf16.msra.mxu0 0
    %1181 = vmatprep.subr.bf16.mxu0 0
    %1182 = vmatpush1.bf16.msra.mxu0 0
    %1183 = vmatprep.subr.bf16.mxu0 0
    %1184 = vmatpush1.bf16.msra.mxu0 0
    %1185 = vmatprep.subr.bf16.mxu0 0
    %1186 = vmatpush1.bf16.msra.mxu0 0
    %1187 = vmatprep.subr.bf16.mxu0 0
    %1188 = vmatpush1.bf16.msra.mxu0 0
    %1189 = vmatprep.subr.bf16.mxu0 0
    %1190 = vmatpush1.bf16.msra.mxu0 0
    %1191 = vmatprep.subr.bf16.mxu0 0
    %1192 = vmatpush1.bf16.msra.mxu0 0
    %1193 = vmatprep.subr.bf16.mxu0 0
    %1194 = vmatpush1.bf16.msra.mxu0 0
    %1195 = vmatprep.subr.bf16.mxu0 0
    %1196 = vmatpush1.bf16.msra.mxu0 0
    %1197 = vmatprep.subr.bf16.mxu0 0
    %1198 = vmatpush1.bf16.msra.mxu0 0
    %1199 = vmatprep.subr.bf16.mxu0 0
    %1200 = vmatpush1.bf16.msra.mxu0 0
    %1201 = vmatprep.subr.bf16.mxu0 0
    %1202 = vmatpush1.bf16.msra.mxu0 0
    %1203 = vmatprep.subr.bf16.mxu0 0
    %1204 = vmatpush1.bf16.msra.mxu0 0
    %1205 = vmatprep.subr.bf16.mxu0 0
    %1206 = vmatpush1.bf16.msra.mxu0 0
    %1207 = vmatprep.mubr.bf16.mxu0 0
    %1208 = vmatmul.mubr.bf16.gmra.mrb[0].mxu0 %v1173
    %v1209 = vpop.f32.mrb[0].mxu0
    %v1210 = vadd.f32 %v1158, %v1209
    %v1211 = vpop.f32.mrb[0].mxu0
    %v1212 = vpop.f32.mrb[0].mxu0
    %v1213 = vadd.f32 %v1158, %v1212
    %v1214 = vpop.f32.mrb[0].mxu0
    %1215 = vdwg.mxu0
    %v1216 = vpack.c.bf16 %v1213, %v1210
    %v1217 = vpack.c.bf16 %v1210, %v1210
    %v1218 = vpack.c.bf16 %v1213, %v1213
    %1221 = vrot.lane.b32.xlu0 %v1217, 120
    %v1222 = vpop.permute.xlu0 %1221
    %1223 = vrot.lane.b32.xlu0 %v1218, 120
    %v1224 = vpop.permute.xlu0 %1223
    %1225 = vrot.lane.b32.xlu0 %v1217, 112
    %v1226 = vpop.permute.xlu0 %1225
    %1227 = vrot.lane.b32.xlu0 %v1218, 112
    %v1228 = vpop.permute.xlu0 %1227
    %1229 = vrot.lane.b32.xlu0 %v1217, 104
    %v1230 = vpop.permute.xlu0 %1229
    %1231 = vrot.lane.b32.xlu0 %v1218, 104
    %v1232 = vpop.permute.xlu0 %1231
    %1234 = vrot.lane.b32.xlu0 %v1216, 120
    %v1235 = vpop.permute.xlu0 %1234
    %1236 = vrot.lane.b32.xlu0 %v1216, 112
    %v1237 = vpop.permute.xlu0 %1236
    %1238 = vrot.lane.b32.xlu0 %v1216, 104
    %v1239 = vpop.permute.xlu0 %1238
    %v1240 = vunpack.c.l.b16 %v1217
    %v1241 = vunpack.c.l.b16 %v1218
    %v1242 = vrot.slane %v1241, 7
    %vm1243 = vcmask 1041409
    %v1244 = vsel %vm1243, %v1242, %v1240
    %v1245 = vpack.c.b16 %v1244, %v1244
    %1246 = vrot.lane.b32.xlu0 %v1216, 96
    %v1247 = vpop.permute.xlu0 %1246
    %v1249 = vsel %vm187, %v1245, 0
    %v1252 = vsel %vm187, %v1247, 0
    %1254 = vmatprep.subr.bf16.mxu0 0
    %1255 = vmatpush1.bf16.xpose.msra.mxu0 %v1252
    %1256 = vmatprep.subr.bf16.mxu0 0
    %1257 = vmatpush1.bf16.xpose.msra.mxu0 0
    %1258 = vmatprep.subr.bf16.mxu0 0
    %1259 = vmatpush1.bf16.xpose.msra.mxu0 0
    %1260 = vmatprep.subr.bf16.mxu0 0
    %1261 = vmatpush1.bf16.xpose.msra.mxu0 0
    %1262 = vmatprep.subr.bf16.mxu0 0
    %1263 = vmatpush1.bf16.xpose.msra.mxu0 0
    %1264 = vmatprep.subr.bf16.mxu0 0
    %1265 = vmatpush1.bf16.xpose.msra.mxu0 0
    %1266 = vmatprep.subr.bf16.mxu0 0
    %1267 = vmatpush1.bf16.xpose.msra.mxu0 0
    %1268 = vmatprep.subr.bf16.mxu0 0
    %1269 = vmatpush1.bf16.xpose.msra.mxu0 0
    %1270 = vmatprep.subr.bf16.mxu0 0
    %1271 = vmatpush1.bf16.xpose.msra.mxu0 0
    %1272 = vmatprep.subr.bf16.mxu0 0
    %1273 = vmatpush1.bf16.xpose.msra.mxu0 0
    %1274 = vmatprep.subr.bf16.mxu0 0
    %1275 = vmatpush1.bf16.xpose.msra.mxu0 0
    %1276 = vmatprep.subr.bf16.mxu0 0
    %1277 = vmatpush1.bf16.xpose.msra.mxu0 0
    %1278 = vmatprep.subr.bf16.mxu0 0
    %1279 = vmatpush1.bf16.xpose.msra.mxu0 0
    %1280 = vmatprep.subr.bf16.mxu0 0
    %1281 = vmatpush1.bf16.xpose.msra.mxu0 0
    %1282 = vmatprep.subr.bf16.mxu0 0
    %1283 = vmatpush1.bf16.xpose.msra.mxu0 0
    %1284 = vmatprep.subr.bf16.mxu0 0
    %1285 = vmatpush1.bf16.xpose.msra.mxu0 0
    %1286 = vmatprep.mubr.bf16.mxu0 0
    %1287 = vmatmul.mubr.bf16.gmra.mrb[0].mxu0 %v1249
    %v1288 = vpop.f32.mrb[0].mxu0
    %v1289 = vadd.f32 %v108, %v1288
    %v1290 = vpop.f32.mrb[0].mxu0
    %v1291 = vpop.f32.mrb[0].mxu0
    %v1292 = vpop.f32.mrb[0].mxu0
    %1293 = vdwg.mxu0
    %v1294 = vunpack.c.l.b16 %v1222
    %v1295 = vunpack.c.l.b16 %v1224
    %v1296 = vrot.slane %v1295, 7
    %v1297 = vsel %vm1243, %v1296, %v1294
    %v1298 = vpack.c.b16 %v1297, %v1297
    %1299 = vrot.lane.b32.xlu0 %v1235, 96
    %v1300 = vpop.permute.xlu0 %1299
    %v1302 = vsel %vm187, %v1298, 0
    %v1305 = vsel %vm187, %v1300, 0
    %1307 = vmatprep.subr.bf16.mxu0 0
    %1308 = vmatpush1.bf16.xpose.msra.mxu0 %v1305
    %1309 = vmatprep.subr.bf16.mxu0 0
    %1310 = vmatpush1.bf16.xpose.msra.mxu0 0
    %1311 = vmatprep.subr.bf16.mxu0 0
    %1312 = vmatpush1.bf16.xpose.msra.mxu0 0
    %1313 = vmatprep.subr.bf16.mxu0 0
    %1314 = vmatpush1.bf16.xpose.msra.mxu0 0
    %1315 = vmatprep.subr.bf16.mxu0 0
    %1316 = vmatpush1.bf16.xpose.msra.mxu0 0
    %1317 = vmatprep.subr.bf16.mxu0 0
    %1318 = vmatpush1.bf16.xpose.msra.mxu0 0
    %1319 = vmatprep.subr.bf16.mxu0 0
    %1320 = vmatpush1.bf16.xpose.msra.mxu0 0
    %1321 = vmatprep.subr.bf16.mxu0 0
    %1322 = vmatpush1.bf16.xpose.msra.mxu0 0
    %1323 = vmatprep.subr.bf16.mxu0 0
    %1324 = vmatpush1.bf16.xpose.msra.mxu0 0
    %1325 = vmatprep.subr.bf16.mxu0 0
    %1326 = vmatpush1.bf16.xpose.msra.mxu0 0
    %1327 = vmatprep.subr.bf16.mxu0 0
    %1328 = vmatpush1.bf16.xpose.msra.mxu0 0
    %1329 = vmatprep.subr.bf16.mxu0 0
    %1330 = vmatpush1.bf16.xpose.msra.mxu0 0
    %1331 = vmatprep.subr.bf16.mxu0 0
    %1332 = vmatpush1.bf16.xpose.msra.mxu0 0
    %1333 = vmatprep.subr.bf16.mxu0 0
    %1334 = vmatpush1.bf16.xpose.msra.mxu0 0
    %1335 = vmatprep.subr.bf16.mxu0 0
    %1336 = vmatpush1.bf16.xpose.msra.mxu0 0
    %1337 = vmatprep.subr.bf16.mxu0 0
    %1338 = vmatpush1.bf16.xpose.msra.mxu0 0
    %1339 = vmatprep.mubr.bf16.mxu0 0
    %1340 = vmatmul.mubr.bf16.gmra.mrb[0].mxu0 %v1302
    %v1341 = vpop.f32.mrb[0].mxu0
    %v1342 = vadd.f32 %v108, %v1341
    %v1343 = vpop.f32.mrb[0].mxu0
    %v1344 = vpop.f32.mrb[0].mxu0
    %v1345 = vpop.f32.mrb[0].mxu0
    %1346 = vdwg.mxu0
    %v1347 = vunpack.c.l.b16 %v1226
    %v1348 = vunpack.c.l.b16 %v1228
    %v1349 = vrot.slane %v1348, 7
    %v1350 = vsel %vm1243, %v1349, %v1347
    %v1351 = vpack.c.b16 %v1350, %v1350
    %1352 = vrot.lane.b32.xlu0 %v1237, 96
    %v1353 = vpop.permute.xlu0 %1352
    %v1355 = vsel %vm187, %v1351, 0
    %v1358 = vsel %vm187, %v1353, 0
    %1360 = vmatprep.subr.bf16.mxu0 0
    %1361 = vmatpush1.bf16.xpose.msra.mxu0 %v1358
    %1362 = vmatprep.subr.bf16.mxu0 0
    %1363 = vmatpush1.bf16.xpose.msra.mxu0 0
    %1364 = vmatprep.subr.bf16.mxu0 0
    %1365 = vmatpush1.bf16.xpose.msra.mxu0 0
    %1366 = vmatprep.subr.bf16.mxu0 0
    %1367 = vmatpush1.bf16.xpose.msra.mxu0 0
    %1368 = vmatprep.subr.bf16.mxu0 0
    %1369 = vmatpush1.bf16.xpose.msra.mxu0 0
    %1370 = vmatprep.subr.bf16.mxu0 0
    %1371 = vmatpush1.bf16.xpose.msra.mxu0 0
    %1372 = vmatprep.subr.bf16.mxu0 0
    %1373 = vmatpush1.bf16.xpose.msra.mxu0 0
    %1374 = vmatprep.subr.bf16.mxu0 0
    %1375 = vmatpush1.bf16.xpose.msra.mxu0 0
    %1376 = vmatprep.subr.bf16.mxu0 0
    %1377 = vmatpush1.bf16.xpose.msra.mxu0 0
    %1378 = vmatprep.subr.bf16.mxu0 0
    %1379 = vmatpush1.bf16.xpose.msra.mxu0 0
    %1380 = vmatprep.subr.bf16.mxu0 0
    %1381 = vmatpush1.bf16.xpose.msra.mxu0 0
    %1382 = vmatprep.subr.bf16.mxu0 0
    %1383 = vmatpush1.bf16.xpose.msra.mxu0 0
    %1384 = vmatprep.subr.bf16.mxu0 0
    %1385 = vmatpush1.bf16.xpose.msra.mxu0 0
    %1386 = vmatprep.subr.bf16.mxu0 0
    %1387 = vmatpush1.bf16.xpose.msra.mxu0 0
    %1388 = vmatprep.subr.bf16.mxu0 0
    %1389 = vmatpush1.bf16.xpose.msra.mxu0 0
    %1390 = vmatprep.subr.bf16.mxu0 0
    %1391 = vmatpush1.bf16.xpose.msra.mxu0 0
    %1392 = vmatprep.mubr.bf16.mxu0 0
    %1393 = vmatmul.mubr.bf16.gmra.mrb[0].mxu0 %v1355
    %v1394 = vpop.f32.mrb[0].mxu0
    %v1395 = vadd.f32 %v108, %v1394
    %v1396 = vpop.f32.mrb[0].mxu0
    %v1397 = vpop.f32.mrb[0].mxu0
    %v1398 = vpop.f32.mrb[0].mxu0
    %1399 = vdwg.mxu0
    %v1400 = vunpack.c.l.b16 %v1230
    %v1401 = vunpack.c.l.b16 %v1232
    %v1402 = vrot.slane %v1401, 7
    %v1403 = vsel %vm1243, %v1402, %v1400
    %v1404 = vpack.c.b16 %v1403, %v1403
    %1405 = vrot.lane.b32.xlu0 %v1239, 96
    %v1406 = vpop.permute.xlu0 %1405
    %v1408 = vsel %vm187, %v1404, 0
    %v1411 = vsel %vm187, %v1406, 0
    %1413 = vmatprep.subr.bf16.mxu0 0
    %1414 = vmatpush1.bf16.xpose.msra.mxu0 %v1411
    %1415 = vmatprep.subr.bf16.mxu0 0
    %1416 = vmatpush1.bf16.xpose.msra.mxu0 0
    %1417 = vmatprep.subr.bf16.mxu0 0
    %1418 = vmatpush1.bf16.xpose.msra.mxu0 0
    %1419 = vmatprep.subr.bf16.mxu0 0
    %1420 = vmatpush1.bf16.xpose.msra.mxu0 0
    %1421 = vmatprep.subr.bf16.mxu0 0
    %1422 = vmatpush1.bf16.xpose.msra.mxu0 0
    %1423 = vmatprep.subr.bf16.mxu0 0
    %1424 = vmatpush1.bf16.xpose.msra.mxu0 0
    %1425 = vmatprep.subr.bf16.mxu0 0
    %1426 = vmatpush1.bf16.xpose.msra.mxu0 0
    %1427 = vmatprep.subr.bf16.mxu0 0
    %1428 = vmatpush1.bf16.xpose.msra.mxu0 0
    %1429 = vmatprep.subr.bf16.mxu0 0
    %1430 = vmatpush1.bf16.xpose.msra.mxu0 0
    %1431 = vmatprep.subr.bf16.mxu0 0
    %1432 = vmatpush1.bf16.xpose.msra.mxu0 0
    %1433 = vmatprep.subr.bf16.mxu0 0
    %1434 = vmatpush1.bf16.xpose.msra.mxu0 0
    %1435 = vmatprep.subr.bf16.mxu0 0
    %1436 = vmatpush1.bf16.xpose.msra.mxu0 0
    %1437 = vmatprep.subr.bf16.mxu0 0
    %1438 = vmatpush1.bf16.xpose.msra.mxu0 0
    %1439 = vmatprep.subr.bf16.mxu0 0
    %1440 = vmatpush1.bf16.xpose.msra.mxu0 0
    %1441 = vmatprep.subr.bf16.mxu0 0
    %1442 = vmatpush1.bf16.xpose.msra.mxu0 0
    %1443 = vmatprep.subr.bf16.mxu0 0
    %1444 = vmatpush1.bf16.xpose.msra.mxu0 0
    %1445 = vmatprep.mubr.bf16.mxu0 0
    %1446 = vmatmul.mubr.bf16.gmra.mrb[0].mxu0 %v1408
    %v1447 = vpop.f32.mrb[0].mxu0
    %v1448 = vadd.f32 %v108, %v1447
    %v1449 = vpop.f32.mrb[0].mxu0
    %v1450 = vpop.f32.mrb[0].mxu0
    %v1451 = vpop.f32.mrb[0].mxu0
    %1452 = vdwg.mxu0
    %vm1453 = vcmask 123904
    %v1454 = vsel %vm1453, %v1289, -inf
    %1455 = vmax.xlane.f32.xlu0 %v1454
    %v1456 = vpop.xlane.xlu0 %1455
    %v1457 = vsel %vm1453, %v1342, -inf
    %1458 = vmax.xlane.f32.xlu0 %v1457
    %v1459 = vpop.xlane.xlu0 %1458
    %v1460 = vsel %vm1453, %v1395, -inf
    %1461 = vmax.xlane.f32.xlu0 %v1460
    %v1462 = vpop.xlane.xlu0 %1461
    %v1463 = vsel %vm1453, %v1448, -inf
    %1464 = vmax.xlane.f32.xlu0 %v1463
    %v1465 = vpop.xlane.xlu0 %1464
    %v1466 = vsub.f32 %v1289, %v1456
    %v1467 = vsub.f32 %v1342, %v1459
    %v1468 = vsub.f32 %v1395, %v1462
    %v1469 = vsub.f32 %v1448, %v1465
    %v1470 = vmul.f32 %v1466, 1.442695
    %v1471 = vpow.pop %v1470
    %v1472 = vmul.f32 %v1467, 1.442695
    %v1473 = vpow.pop %v1472
    %v1474 = vmul.f32 %v1468, 1.442695
    %v1475 = vpow.pop %v1474
    %v1476 = vmul.f32 %v1469, 1.442695
    %v1477 = vpow.pop %v1476
    %v1478 = vsel %vm1453, %v1471, 0.0
    %1479 = vadd.xlane.f32.xlu0 %v1478
    %v1480 = vpop.xlane.xlu0 %1479
    %v1481 = vsel %vm1453, %v1473, 0.0
    %1482 = vadd.xlane.f32.xlu0 %v1481
    %v1483 = vpop.xlane.xlu0 %1482
    %v1484 = vsel %vm1453, %v1475, 0.0
    %1485 = vadd.xlane.f32.xlu0 %v1484
    %v1486 = vpop.xlane.xlu0 %1485
    %v1487 = vsel %vm1453, %v1477, 0.0
    %1488 = vadd.xlane.f32.xlu0 %v1487
    %v1489 = vpop.xlane.xlu0 %1488
    %v1490 = vrcp.pop %v1480
    %v1491 = vrcp.pop %v1483
    %v1492 = vrcp.pop %v1486
    %v1493 = vrcp.pop %v1489
    %v1494 = vmul.f32 %v1471, %v1490
    %v1495 = vmul.f32 %v1473, %v1491
    %v1496 = vmul.f32 %v1475, %v1492
    %v1497 = vmul.f32 %v1477, %v1493
    %v1498 = vpack.c.bf16 %v1494, %v1494
    %v1499 = vpack.c.bf16 %v1495, %v1495
    %v1500 = vpack.c.bf16 %v1496, %v1496
    %v1501 = vpack.c.bf16 %v1497, %v1497
    %1502 = vrot.lane.b32.xlu0 %v1216, 64
    %v1503 = vpop.permute.xlu0 %1502
    %v1506 = vsel %vm382, %v1498, 0
    %1508 = vmatprep.subr.bf16.mxu0 0
    %1509 = vmatpush1.bf16.msra.mxu0 %v1503
    %1510 = vmatprep.subr.bf16.mxu0 0
    %1511 = vmatpush1.bf16.msra.mxu0 0
    %1512 = vmatprep.subr.bf16.mxu0 0
    %1513 = vmatpush1.bf16.msra.mxu0 0
    %1514 = vmatprep.subr.bf16.mxu0 0
    %1515 = vmatpush1.bf16.msra.mxu0 0
    %1516 = vmatprep.subr.bf16.mxu0 0
    %1517 = vmatpush1.bf16.msra.mxu0 0
    %1518 = vmatprep.subr.bf16.mxu0 0
    %1519 = vmatpush1.bf16.msra.mxu0 0
    %1520 = vmatprep.subr.bf16.mxu0 0
    %1521 = vmatpush1.bf16.msra.mxu0 0
    %1522 = vmatprep.subr.bf16.mxu0 0
    %1523 = vmatpush1.bf16.msra.mxu0 0
    %1524 = vmatprep.subr.bf16.mxu0 0
    %1525 = vmatpush1.bf16.msra.mxu0 0
    %1526 = vmatprep.subr.bf16.mxu0 0
    %1527 = vmatpush1.bf16.msra.mxu0 0
    %1528 = vmatprep.subr.bf16.mxu0 0
    %1529 = vmatpush1.bf16.msra.mxu0 0
    %1530 = vmatprep.subr.bf16.mxu0 0
    %1531 = vmatpush1.bf16.msra.mxu0 0
    %1532 = vmatprep.subr.bf16.mxu0 0
    %1533 = vmatpush1.bf16.msra.mxu0 0
    %1534 = vmatprep.subr.bf16.mxu0 0
    %1535 = vmatpush1.bf16.msra.mxu0 0
    %1536 = vmatprep.subr.bf16.mxu0 0
    %1537 = vmatpush1.bf16.msra.mxu0 0
    %1538 = vmatprep.subr.bf16.mxu0 0
    %1539 = vmatpush1.bf16.msra.mxu0 0
    %1540 = vmatprep.mubr.bf16.mxu0 0
    %1541 = vmatmul.mubr.bf16.gmra.mrb[0].mxu0 %v1506
    %v1542 = vpop.f32.mrb[0].mxu0
    %v1543 = vadd.f32 0.0, %v1542
    %v1544 = vpop.f32.mrb[0].mxu0
    %v1545 = vpop.f32.mrb[0].mxu0
    %v1546 = vpop.f32.mrb[0].mxu0
    %1547 = vdwg.mxu0
    %1548 = vrot.lane.b32.xlu0 %v1235, 64
    %v1549 = vpop.permute.xlu0 %1548
    %v1552 = vsel %vm382, %v1499, 0
    %1554 = vmatprep.subr.bf16.mxu0 0
    %1555 = vmatpush1.bf16.msra.mxu0 %v1549
    %1556 = vmatprep.subr.bf16.mxu0 0
    %1557 = vmatpush1.bf16.msra.mxu0 0
    %1558 = vmatprep.subr.bf16.mxu0 0
    %1559 = vmatpush1.bf16.msra.mxu0 0
    %1560 = vmatprep.subr.bf16.mxu0 0
    %1561 = vmatpush1.bf16.msra.mxu0 0
    %1562 = vmatprep.subr.bf16.mxu0 0
    %1563 = vmatpush1.bf16.msra.mxu0 0
    %1564 = vmatprep.subr.bf16.mxu0 0
    %1565 = vmatpush1.bf16.msra.mxu0 0
    %1566 = vmatprep.subr.bf16.mxu0 0
    %1567 = vmatpush1.bf16.msra.mxu0 0
    %1568 = vmatprep.subr.bf16.mxu0 0
    %1569 = vmatpush1.bf16.msra.mxu0 0
    %1570 = vmatprep.subr.bf16.mxu0 0
    %1571 = vmatpush1.bf16.msra.mxu0 0
    %1572 = vmatprep.subr.bf16.mxu0 0
    %1573 = vmatpush1.bf16.msra.mxu0 0
    %1574 = vmatprep.subr.bf16.mxu0 0
    %1575 = vmatpush1.bf16.msra.mxu0 0
    %1576 = vmatprep.subr.bf16.mxu0 0
    %1577 = vmatpush1.bf16.msra.mxu0 0
    %1578 = vmatprep.subr.bf16.mxu0 0
    %1579 = vmatpush1.bf16.msra.mxu0 0
    %1580 = vmatprep.subr.bf16.mxu0 0
    %1581 = vmatpush1.bf16.msra.mxu0 0
    %1582 = vmatprep.subr.bf16.mxu0 0
    %1583 = vmatpush1.bf16.msra.mxu0 0
    %1584 = vmatprep.subr.bf16.mxu0 0
    %1585 = vmatpush1.bf16.msra.mxu0 0
    %1586 = vmatprep.mubr.bf16.mxu0 0
    %1587 = vmatmul.mubr.bf16.gmra.mrb[0].mxu0 %v1552
    %v1588 = vpop.f32.mrb[0].mxu0
    %v1589 = vadd.f32 0.0, %v1588
    %v1590 = vpop.f32.mrb[0].mxu0
    %v1591 = vpop.f32.mrb[0].mxu0
    %v1592 = vpop.f32.mrb[0].mxu0
    %1593 = vdwg.mxu0
    %1594 = vrot.lane.b32.xlu0 %v1237, 64
    %v1595 = vpop.permute.xlu0 %1594
    %v1598 = vsel %vm382, %v1500, 0
    %1600 = vmatprep.subr.bf16.mxu0 0
    %1601 = vmatpush1.bf16.msra.mxu0 %v1595
    %1602 = vmatprep.subr.bf16.mxu0 0
    %1603 = vmatpush1.bf16.msra.mxu0 0
    %1604 = vmatprep.subr.bf16.mxu0 0
    %1605 = vmatpush1.bf16.msra.mxu0 0
    %1606 = vmatprep.subr.bf16.mxu0 0
    %1607 = vmatpush1.bf16.msra.mxu0 0
    %1608 = vmatprep.subr.bf16.mxu0 0
    %1609 = vmatpush1.bf16.msra.mxu0 0
    %1610 = vmatprep.subr.bf16.mxu0 0
    %1611 = vmatpush1.bf16.msra.mxu0 0
    %1612 = vmatprep.subr.bf16.mxu0 0
    %1613 = vmatpush1.bf16.msra.mxu0 0
    %1614 = vmatprep.subr.bf16.mxu0 0
    %1615 = vmatpush1.bf16.msra.mxu0 0
    %1616 = vmatprep.subr.bf16.mxu0 0
    %1617 = vmatpush1.bf16.msra.mxu0 0
    %1618 = vmatprep.subr.bf16.mxu0 0
    %1619 = vmatpush1.bf16.msra.mxu0 0
    %1620 = vmatprep.subr.bf16.mxu0 0
    %1621 = vmatpush1.bf16.msra.mxu0 0
    %1622 = vmatprep.subr.bf16.mxu0 0
    %1623 = vmatpush1.bf16.msra.mxu0 0
    %1624 = vmatprep.subr.bf16.mxu0 0
    %1625 = vmatpush1.bf16.msra.mxu0 0
    %1626 = vmatprep.subr.bf16.mxu0 0
    %1627 = vmatpush1.bf16.msra.mxu0 0
    %1628 = vmatprep.subr.bf16.mxu0 0
    %1629 = vmatpush1.bf16.msra.mxu0 0
    %1630 = vmatprep.subr.bf16.mxu0 0
    %1631 = vmatpush1.bf16.msra.mxu0 0
    %1632 = vmatprep.mubr.bf16.mxu0 0
    %1633 = vmatmul.mubr.bf16.gmra.mrb[0].mxu0 %v1598
    %v1634 = vpop.f32.mrb[0].mxu0
    %v1635 = vadd.f32 0.0, %v1634
    %v1636 = vpop.f32.mrb[0].mxu0
    %v1637 = vpop.f32.mrb[0].mxu0
    %v1638 = vpop.f32.mrb[0].mxu0
    %1639 = vdwg.mxu0
    %1640 = vrot.lane.b32.xlu0 %v1239, 64
    %v1641 = vpop.permute.xlu0 %1640
    %v1644 = vsel %vm382, %v1501, 0
    %1646 = vmatprep.subr.bf16.mxu0 0
    %1647 = vmatpush1.bf16.msra.mxu0 %v1641
    %1648 = vmatprep.subr.bf16.mxu0 0
    %1649 = vmatpush1.bf16.msra.mxu0 0
    %1650 = vmatprep.subr.bf16.mxu0 0
    %1651 = vmatpush1.bf16.msra.mxu0 0
    %1652 = vmatprep.subr.bf16.mxu0 0
    %1653 = vmatpush1.bf16.msra.mxu0 0
    %1654 = vmatprep.subr.bf16.mxu0 0
    %1655 = vmatpush1.bf16.msra.mxu0 0
    %1656 = vmatprep.subr.bf16.mxu0 0
    %1657 = vmatpush1.bf16.msra.mxu0 0
    %1658 = vmatprep.subr.bf16.mxu0 0
    %1659 = vmatpush1.bf16.msra.mxu0 0
    %1660 = vmatprep.subr.bf16.mxu0 0
    %1661 = vmatpush1.bf16.msra.mxu0 0
    %1662 = vmatprep.subr.bf16.mxu0 0
    %1663 = vmatpush1.bf16.msra.mxu0 0
    %1664 = vmatprep.subr.bf16.mxu0 0
    %1665 = vmatpush1.bf16.msra.mxu0 0
    %1666 = vmatprep.subr.bf16.mxu0 0
    %1667 = vmatpush1.bf16.msra.mxu0 0
    %1668 = vmatprep.subr.bf16.mxu0 0
    %1669 = vmatpush1.bf16.msra.mxu0 0
    %1670 = vmatprep.subr.bf16.mxu0 0
    %1671 = vmatpush1.bf16.msra.mxu0 0
    %1672 = vmatprep.subr.bf16.mxu0 0
    %1673 = vmatpush1.bf16.msra.mxu0 0
    %1674 = vmatprep.subr.bf16.mxu0 0
    %1675 = vmatpush1.bf16.msra.mxu0 0
    %1676 = vmatprep.subr.bf16.mxu0 0
    %1677 = vmatpush1.bf16.msra.mxu0 0
    %1678 = vmatprep.mubr.bf16.mxu0 0
    %1679 = vmatmul.mubr.bf16.gmra.mrb[0].mxu0 %v1644
    %v1680 = vpop.f32.mrb[0].mxu0
    %v1681 = vadd.f32 0.0, %v1680
    %v1682 = vpop.f32.mrb[0].mxu0
    %v1683 = vpop.f32.mrb[0].mxu0
    %v1684 = vpop.f32.mrb[0].mxu0
    %1685 = vdwg.mxu0
    %v1686 = vpack.c.bf16 %v1543, %v1543
    %v1687 = vpack.c.bf16 %v1589, %v1589
    %v1688 = vpack.c.bf16 %v1635, %v1635
    %v1689 = vpack.c.bf16 %v1681, %v1681
    %s1690 = scalar_lea.vmem %s7, 16
    %v1691 = vld [vmem:[%s1690] sm:$0xf]
    %v1692 = vld [vmem:[%s1690 + $0x4] sm:$0xf]
    %v1693 = vld [vmem:[%s1690 + $0x8] sm:$0xf]
    %v1694 = vld [vmem:[%s1690 + $0xc] sm:$0xf]
    %v1696 = vsel %vm187, %v1686, 0
    %v1699 = vsel %vm674, %v1691, 0
    %1701 = vmatprep.subr.bf16.mxu0 0
    %1702 = vmatpush1.bf16.msra.mxu0 %v1699
    %1703 = vmatprep.subr.bf16.mxu0 0
    %1704 = vmatpush1.bf16.msra.mxu0 0
    %1705 = vmatprep.subr.bf16.mxu0 0
    %1706 = vmatpush1.bf16.msra.mxu0 0
    %1707 = vmatprep.subr.bf16.mxu0 0
    %1708 = vmatpush1.bf16.msra.mxu0 0
    %1709 = vmatprep.subr.bf16.mxu0 0
    %1710 = vmatpush1.bf16.msra.mxu0 0
    %1711 = vmatprep.subr.bf16.mxu0 0
    %1712 = vmatpush1.bf16.msra.mxu0 0
    %1713 = vmatprep.subr.bf16.mxu0 0
    %1714 = vmatpush1.bf16.msra.mxu0 0
    %1715 = vmatprep.subr.bf16.mxu0 0
    %1716 = vmatpush1.bf16.msra.mxu0 0
    %1717 = vmatprep.subr.bf16.mxu0 0
    %1718 = vmatpush1.bf16.msra.mxu0 0
    %1719 = vmatprep.subr.bf16.mxu0 0
    %1720 = vmatpush1.bf16.msra.mxu0 0
    %1721 = vmatprep.subr.bf16.mxu0 0
    %1722 = vmatpush1.bf16.msra.mxu0 0
    %1723 = vmatprep.subr.bf16.mxu0 0
    %1724 = vmatpush1.bf16.msra.mxu0 0
    %1725 = vmatprep.subr.bf16.mxu0 0
    %1726 = vmatpush1.bf16.msra.mxu0 0
    %1727 = vmatprep.subr.bf16.mxu0 0
    %1728 = vmatpush1.bf16.msra.mxu0 0
    %1729 = vmatprep.subr.bf16.mxu0 0
    %1730 = vmatpush1.bf16.msra.mxu0 0
    %1731 = vmatprep.subr.bf16.mxu0 0
    %1732 = vmatpush1.bf16.msra.mxu0 0
    %1733 = vmatprep.mubr.bf16.mxu0 0
    %1734 = vmatmul.mubr.bf16.gmra.mrb[0].mxu0 %v1696
    %v1735 = vpop.f32.mrb[0].mxu0
    %v1736 = vadd.f32 0.0, %v1735
    %v1737 = vpop.f32.mrb[0].mxu0
    %v1738 = vpop.f32.mrb[0].mxu0
    %v1739 = vpop.f32.mrb[0].mxu0
    %1740 = vdwg.mxu0
    %v1742 = vsel %vm187, %v1687, 0
    %v1745 = vsel %vm674, %v1692, 0
    %1747 = vmatprep.subr.bf16.mxu0 0
    %1748 = vmatpush1.bf16.msra.mxu0 %v1745
    %1749 = vmatprep.subr.bf16.mxu0 0
    %1750 = vmatpush1.bf16.msra.mxu0 0
    %1751 = vmatprep.subr.bf16.mxu0 0
    %1752 = vmatpush1.bf16.msra.mxu0 0
    %1753 = vmatprep.subr.bf16.mxu0 0
    %1754 = vmatpush1.bf16.msra.mxu0 0
    %1755 = vmatprep.subr.bf16.mxu0 0
    %1756 = vmatpush1.bf16.msra.mxu0 0
    %1757 = vmatprep.subr.bf16.mxu0 0
    %1758 = vmatpush1.bf16.msra.mxu0 0
    %1759 = vmatprep.subr.bf16.mxu0 0
    %1760 = vmatpush1.bf16.msra.mxu0 0
    %1761 = vmatprep.subr.bf16.mxu0 0
    %1762 = vmatpush1.bf16.msra.mxu0 0
    %1763 = vmatprep.subr.bf16.mxu0 0
    %1764 = vmatpush1.bf16.msra.mxu0 0
    %1765 = vmatprep.subr.bf16.mxu0 0
    %1766 = vmatpush1.bf16.msra.mxu0 0
    %1767 = vmatprep.subr.bf16.mxu0 0
    %1768 = vmatpush1.bf16.msra.mxu0 0
    %1769 = vmatprep.subr.bf16.mxu0 0
    %1770 = vmatpush1.bf16.msra.mxu0 0
    %1771 = vmatprep.subr.bf16.mxu0 0
    %1772 = vmatpush1.bf16.msra.mxu0 0
    %1773 = vmatprep.subr.bf16.mxu0 0
    %1774 = vmatpush1.bf16.msra.mxu0 0
    %1775 = vmatprep.subr.bf16.mxu0 0
    %1776 = vmatpush1.bf16.msra.mxu0 0
    %1777 = vmatprep.subr.bf16.mxu0 0
    %1778 = vmatpush1.bf16.msra.mxu0 0
    %1779 = vmatprep.mubr.bf16.mxu0 0
    %1780 = vmatmul.mubr.bf16.gmra.mrb[0].mxu0 %v1742
    %v1781 = vpop.f32.mrb[0].mxu0
    %v1782 = vadd.f32 0.0, %v1781
    %v1783 = vpop.f32.mrb[0].mxu0
    %v1784 = vpop.f32.mrb[0].mxu0
    %v1785 = vpop.f32.mrb[0].mxu0
    %1786 = vdwg.mxu0
    %v1788 = vsel %vm187, %v1688, 0
    %v1791 = vsel %vm674, %v1693, 0
    %1793 = vmatprep.subr.bf16.mxu0 0
    %1794 = vmatpush1.bf16.msra.mxu0 %v1791
    %1795 = vmatprep.subr.bf16.mxu0 0
    %1796 = vmatpush1.bf16.msra.mxu0 0
    %1797 = vmatprep.subr.bf16.mxu0 0
    %1798 = vmatpush1.bf16.msra.mxu0 0
    %1799 = vmatprep.subr.bf16.mxu0 0
    %1800 = vmatpush1.bf16.msra.mxu0 0
    %1801 = vmatprep.subr.bf16.mxu0 0
    %1802 = vmatpush1.bf16.msra.mxu0 0
    %1803 = vmatprep.subr.bf16.mxu0 0
    %1804 = vmatpush1.bf16.msra.mxu0 0
    %1805 = vmatprep.subr.bf16.mxu0 0
    %1806 = vmatpush1.bf16.msra.mxu0 0
    %1807 = vmatprep.subr.bf16.mxu0 0
    %1808 = vmatpush1.bf16.msra.mxu0 0
    %1809 = vmatprep.subr.bf16.mxu0 0
    %1810 = vmatpush1.bf16.msra.mxu0 0
    %1811 = vmatprep.subr.bf16.mxu0 0
    %1812 = vmatpush1.bf16.msra.mxu0 0
    %1813 = vmatprep.subr.bf16.mxu0 0
    %1814 = vmatpush1.bf16.msra.mxu0 0
    %1815 = vmatprep.subr.bf16.mxu0 0
    %1816 = vmatpush1.bf16.msra.mxu0 0
    %1817 = vmatprep.subr.bf16.mxu0 0
    %1818 = vmatpush1.bf16.msra.mxu0 0
    %1819 = vmatprep.subr.bf16.mxu0 0
    %1820 = vmatpush1.bf16.msra.mxu0 0
    %1821 = vmatprep.subr.bf16.mxu0 0
    %1822 = vmatpush1.bf16.msra.mxu0 0
    %1823 = vmatprep.subr.bf16.mxu0 0
    %1824 = vmatpush1.bf16.msra.mxu0 0
    %1825 = vmatprep.mubr.bf16.mxu0 0
    %1826 = vmatmul.mubr.bf16.gmra.mrb[0].mxu0 %v1788
    %v1827 = vpop.f32.mrb[0].mxu0
    %v1828 = vadd.f32 0.0, %v1827
    %v1829 = vpop.f32.mrb[0].mxu0
    %v1830 = vpop.f32.mrb[0].mxu0
    %v1831 = vpop.f32.mrb[0].mxu0
    %1832 = vdwg.mxu0
    %v1834 = vsel %vm187, %v1689, 0
    %v1837 = vsel %vm674, %v1694, 0
    %1839 = vmatprep.subr.bf16.mxu0 0
    %1840 = vmatpush1.bf16.msra.mxu0 %v1837
    %1841 = vmatprep.subr.bf16.mxu0 0
    %1842 = vmatpush1.bf16.msra.mxu0 0
    %1843 = vmatprep.subr.bf16.mxu0 0
    %1844 = vmatpush1.bf16.msra.mxu0 0
    %1845 = vmatprep.subr.bf16.mxu0 0
    %1846 = vmatpush1.bf16.msra.mxu0 0
    %1847 = vmatprep.subr.bf16.mxu0 0
    %1848 = vmatpush1.bf16.msra.mxu0 0
    %1849 = vmatprep.subr.bf16.mxu0 0
    %1850 = vmatpush1.bf16.msra.mxu0 0
    %1851 = vmatprep.subr.bf16.mxu0 0
    %1852 = vmatpush1.bf16.msra.mxu0 0
    %1853 = vmatprep.subr.bf16.mxu0 0
    %1854 = vmatpush1.bf16.msra.mxu0 0
    %1855 = vmatprep.subr.bf16.mxu0 0
    %1856 = vmatpush1.bf16.msra.mxu0 0
    %1857 = vmatprep.subr.bf16.mxu0 0
    %1858 = vmatpush1.bf16.msra.mxu0 0
    %1859 = vmatprep.subr.bf16.mxu0 0
    %1860 = vmatpush1.bf16.msra.mxu0 0
    %1861 = vmatprep.subr.bf16.mxu0 0
    %1862 = vmatpush1.bf16.msra.mxu0 0
    %1863 = vmatprep.subr.bf16.mxu0 0
    %1864 = vmatpush1.bf16.msra.mxu0 0
    %1865 = vmatprep.subr.bf16.mxu0 0
    %1866 = vmatpush1.bf16.msra.mxu0 0
    %1867 = vmatprep.subr.bf16.mxu0 0
    %1868 = vmatpush1.bf16.msra.mxu0 0
    %1869 = vmatprep.subr.bf16.mxu0 0
    %1870 = vmatpush1.bf16.msra.mxu0 0
    %1871 = vmatprep.mubr.bf16.mxu0 0
    %1872 = vmatmul.mubr.bf16.gmra.mrb[0].mxu0 %v1834
    %v1873 = vpop.f32.mrb[0].mxu0
    %v1874 = vadd.f32 0.0, %v1873
    %v1875 = vpop.f32.mrb[0].mxu0
    %v1876 = vpop.f32.mrb[0].mxu0
    %v1877 = vpop.f32.mrb[0].mxu0
    %1878 = vdwg.mxu0
    %vm1879 = vcmask 254976
    %v1880 = vsel %vm1879, %v1736, 0.0
    %v1881 = vsel %vm1879, %v1782, 0.0
    %v1882 = vadd.f32 %v1880, %v1881
    %v1883 = vsel %vm1879, %v1828, 0.0
    %v1884 = vadd.f32 %v1882, %v1883
    %v1885 = vsel %vm1879, %v1874, 0.0
    %v1886 = vadd.f32 %v1884, %v1885
    %s1887 = scalar_lea.vmem %s8, 1
    %v1888 = vld [vmem:[%s1887] sm:$0x1]
    %v1890 = vlaneseq
    %v1891 = vshrl.u32 %v1890, 7
    %v1892 = vsub.s32 0, %v1891
    %v1893 = vrot.slane %v1888, %v1892
    %v1895 = vadd.f32 %v1886, %v1893
    %v1898 = vrot.slane %v1145, 7
    %v1899 = vsel %vm1243, %v1898, %v1144
    %v1901 = vadd.f32 %v1895, %v1899
    %s1902 = scalar_lea.vmem %s9, 1
    %v1903 = vld [vmem:[%s1902] sm:$0x1]
    %s1904 = scalar_lea.vmem %s10, 1
    %v1905 = vld [vmem:[%s1904] sm:$0x1]
    %v1906 = vsel %vm1879, %v1901, 0.0
    %1907 = vadd.xlane.f32.xlu0 %v1906
    %v1908 = vpop.xlane.xlu0 %1907
    %v1909 = vmul.f32 %v1908, %v69
    %v1910 = vsub.f32 %v1901, %v1909
    %v1911 = vmul.f32 %v1910, %v1910
    %v1912 = vsel %vm1879, %v1911, 0.0
    %1913 = vadd.xlane.f32.xlu0 %v1912
    %v1914 = vpop.xlane.xlu0 %1913
    %v1915 = vmul.f32 %v1914, %v69
    %v1916 = vadd.f32 %v1915, 1e-12
    %v1917 = vrsqrt.pop %v1916
    %v1918 = vmul.f32 %v1910, %v1917
    %v1920 = vlaneseq
    %v1921 = vshrl.u32 %v1920, 7
    %v1922 = vsub.s32 0, %v1921
    %v1923 = vrot.slane %v1903, %v1922
    %v1925 = vmul.f32 %v1918, %v1923
    %v1927 = vlaneseq
    %v1928 = vshrl.u32 %v1927, 7
    %v1929 = vsub.s32 0, %v1928
    %v1930 = vrot.slane %v1905, %v1929
    %v1932 = vadd.f32 %v1925, %v1930
    %v1933 = vpack.c.bf16 %v1932, %v1932
    %s1934 = scalar_lea.vmem %s11, 16
    %v1935 = vld [vmem:[%s1934] sm:$0xf]
    %v1936 = vld [vmem:[%s1934 + $0x4] sm:$0xf]
    %v1937 = vld [vmem:[%s1934 + $0x8] sm:$0xf]
    %v1938 = vld [vmem:[%s1934 + $0xc] sm:$0xf]
    %s1939 = scalar_lea.vmem %s12, 1
    %v1940 = vld [vmem:[%s1939] sm:$0x1]
    %v1942 = vlaneseq
    %v1943 = vshrl.u32 %v1942, 7
    %v1944 = vsub.s32 0, %v1943
    %v1945 = vrot.slane %v1940, %v1944
    %v1951 = vunpack.c.l.b16 %v1935
    %v1952 = vunpack.c.l.b16 %v1936
    %v1953 = vunpack.c.l.b16 %v1937
    %v1954 = vunpack.c.l.b16 %v1938
    %v1955 = vpack.c.b16 %v1952, %v1951
    %v1956 = vpack.c.b16 %v1954, %v1953
    %v1960 = vsel %vm62, %v1933, 0
    %1962 = vmatprep.subr.bf16.mxu0 0
    %1963 = vmatpush1.bf16.msra.mxu0 %v1955
    %1964 = vmatprep.subr.bf16.mxu0 0
    %1965 = vmatpush1.bf16.msra.mxu0 %v1956
    %1966 = vmatprep.subr.bf16.mxu0 0
    %1967 = vmatpush1.bf16.msra.mxu0 0
    %1968 = vmatprep.subr.bf16.mxu0 0
    %1969 = vmatpush1.bf16.msra.mxu0 0
    %1970 = vmatprep.subr.bf16.mxu0 0
    %1971 = vmatpush1.bf16.msra.mxu0 0
    %1972 = vmatprep.subr.bf16.mxu0 0
    %1973 = vmatpush1.bf16.msra.mxu0 0
    %1974 = vmatprep.subr.bf16.mxu0 0
    %1975 = vmatpush1.bf16.msra.mxu0 0
    %1976 = vmatprep.subr.bf16.mxu0 0
    %1977 = vmatpush1.bf16.msra.mxu0 0
    %1978 = vmatprep.subr.bf16.mxu0 0
    %1979 = vmatpush1.bf16.msra.mxu0 0
    %1980 = vmatprep.subr.bf16.mxu0 0
    %1981 = vmatpush1.bf16.msra.mxu0 0
    %1982 = vmatprep.subr.bf16.mxu0 0
    %1983 = vmatpush1.bf16.msra.mxu0 0
    %1984 = vmatprep.subr.bf16.mxu0 0
    %1985 = vmatpush1.bf16.msra.mxu0 0
    %1986 = vmatprep.subr.bf16.mxu0 0
    %1987 = vmatpush1.bf16.msra.mxu0 0
    %1988 = vmatprep.subr.bf16.mxu0 0
    %1989 = vmatpush1.bf16.msra.mxu0 0
    %1990 = vmatprep.subr.bf16.mxu0 0
    %1991 = vmatpush1.bf16.msra.mxu0 0
    %1992 = vmatprep.subr.bf16.mxu0 0
    %1993 = vmatpush1.bf16.msra.mxu0 0
    %1994 = vmatprep.mubr.bf16.mxu0 0
    %1995 = vmatmul.mubr.bf16.gmra.mrb[0].mxu0 %v1960
    %v1996 = vpop.f32.mrb[0].mxu0
    %v1997 = vadd.f32 %v1945, %v1996
    %v1998 = vpop.f32.mrb[0].mxu0
    %v1999 = vpop.f32.mrb[0].mxu0
    %v2000 = vpop.f32.mrb[0].mxu0
    %2001 = vdwg.mxu0
    %v2002 = vmul.f32 %v1997, %v1997
    %v2003 = vmul.f32 %v1997, %v2002
    %v2004 = vmul.f32 %v2003, 0.044715
    %v2005 = vadd.f32 %v1997, %v2004
    %v2006 = vmul.f32 %v2005, 0.7978846
    %v2007 = vtanh.pop %v2006
    %v2008 = vadd.f32 %v2007, 1.0
    %v2009 = vmul.f32 %v2008, 0.5
    %v2010 = vmul.f32 %v1997, %v2009
    %v2011 = vpack.c.bf16 %v2010, %v2010
    %s2012 = scalar_lea.vmem %s13, 32
    %v2013 = vld [vmem:[%s2012] sm:$0xf]
    %v2014 = vld [vmem:[%s2012 + $0x4] sm:$0xf]
    %v2015 = vld [vmem:[%s2012 + $0x8] sm:$0xf]
    %v2016 = vld [vmem:[%s2012 + $0xc] sm:$0xf]
    %v2017 = vld [vmem:[%s2012 + $0x10] sm:$0xf]
    %v2018 = vld [vmem:[%s2012 + $0x14] sm:$0xf]
    %v2019 = vld [vmem:[%s2012 + $0x18] sm:$0xf]
    %v2020 = vld [vmem:[%s2012 + $0x1c] sm:$0xf]
    %s2021 = scalar_lea.vmem %s14, 1
    %v2022 = vld [vmem:[%s2021] sm:$0x1]
    %v2024 = vlaneseq
    %v2025 = vshrl.u32 %v2024, 7
    %v2026 = vsub.s32 0, %v2025
    %v2027 = vrot.slane %v2022, %v2026
    %v2037 = vunpack.c.l.b16 %v2013
    %v2038 = vunpack.c.l.b16 %v2014
    %v2039 = vunpack.c.l.b16 %v2015
    %v2040 = vunpack.c.l.b16 %v2016
    %v2041 = vunpack.c.l.b16 %v2017
    %v2042 = vunpack.c.l.b16 %v2018
    %v2043 = vunpack.c.l.b16 %v2019
    %v2044 = vunpack.c.l.b16 %v2020
    %v2045 = vpack.c.b16 %v2038, %v2037
    %v2046 = vpack.c.b16 %v2040, %v2039
    %v2047 = vpack.c.b16 %v2042, %v2041
    %v2048 = vpack.c.b16 %v2044, %v2043
    %v2054 = vsel %vm1055, %v2011, 0
    %2056 = vmatprep.subr.bf16.mxu0 0
    %2057 = vmatpush1.bf16.msra.mxu0 %v2045
    %2058 = vmatprep.subr.bf16.mxu0 0
    %2059 = vmatpush1.bf16.msra.mxu0 %v2046
    %2060 = vmatprep.subr.bf16.mxu0 0
    %2061 = vmatpush1.bf16.msra.mxu0 %v2047
    %2062 = vmatprep.subr.bf16.mxu0 0
    %2063 = vmatpush1.bf16.msra.mxu0 %v2048
    %2064 = vmatprep.subr.bf16.mxu0 0
    %2065 = vmatpush1.bf16.msra.mxu0 0
    %2066 = vmatprep.subr.bf16.mxu0 0
    %2067 = vmatpush1.bf16.msra.mxu0 0
    %2068 = vmatprep.subr.bf16.mxu0 0
    %2069 = vmatpush1.bf16.msra.mxu0 0
    %2070 = vmatprep.subr.bf16.mxu0 0
    %2071 = vmatpush1.bf16.msra.mxu0 0
    %2072 = vmatprep.subr.bf16.mxu0 0
    %2073 = vmatpush1.bf16.msra.mxu0 0
    %2074 = vmatprep.subr.bf16.mxu0 0
    %2075 = vmatpush1.bf16.msra.mxu0 0
    %2076 = vmatprep.subr.bf16.mxu0 0
    %2077 = vmatpush1.bf16.msra.mxu0 0
    %2078 = vmatprep.subr.bf16.mxu0 0
    %2079 = vmatpush1.bf16.msra.mxu0 0
    %2080 = vmatprep.subr.bf16.mxu0 0
    %2081 = vmatpush1.bf16.msra.mxu0 0
    %2082 = vmatprep.subr.bf16.mxu0 0
    %2083 = vmatpush1.bf16.msra.mxu0 0
    %2084 = vmatprep.subr.bf16.mxu0 0
    %2085 = vmatpush1.bf16.msra.mxu0 0
    %2086 = vmatprep.subr.bf16.mxu0 0
    %2087 = vmatpush1.bf16.msra.mxu0 0
    %2088 = vmatprep.mubr.bf16.mxu0 0
    %2089 = vmatmul.mubr.bf16.gmra.mrb[0].mxu0 %v2054
    %v2090 = vpop.f32.mrb[0].mxu0
    %v2091 = vadd.f32 %v2027, %v2090
    %v2092 = vpop.f32.mrb[0].mxu0
    %v2093 = vpop.f32.mrb[0].mxu0
    %v2094 = vpop.f32.mrb[0].mxu0
    %2095 = vdwg.mxu0
    %v2096 = vadd.f32 %v2091, %v1932
    %s2097 = scalar_lea.vmem %s15, 1
    %v2098 = vld [vmem:[%s2097] sm:$0x1]
    %s2099 = scalar_lea.vmem %s16, 1
    %v2100 = vld [vmem:[%s2099] sm:$0x1]
    %v2101 = vsel %vm1879, %v2096, 0.0
    %2102 = vadd.xlane.f32.xlu0 %v2101
    %v2103 = vpop.xlane.xlu0 %2102
    %v2104 = vmul.f32 %v2103, %v69
    %v2105 = vsub.f32 %v2096, %v2104
    %v2106 = vmul.f32 %v2105, %v2105
    %v2107 = vsel %vm1879, %v2106, 0.0
    %2108 = vadd.xlane.f32.xlu0 %v2107
    %v2109 = vpop.xlane.xlu0 %2108
    %v2110 = vmul.f32 %v2109, %v69
    %v2111 = vadd.f32 %v2110, 1e-12
    %v2112 = vrsqrt.pop %v2111
    %v2113 = vmul.f32 %v2105, %v2112
    %v2115 = vlaneseq
    %v2116 = vshrl.u32 %v2115, 7
    %v2117 = vsub.s32 0, %v2116
    %v2118 = vrot.slane %v2098, %v2117
    %v2120 = vmul.f32 %v2113, %v2118
    %v2122 = vlaneseq
    %v2123 = vshrl.u32 %v2122, 7
    %v2124 = vsub.s32 0, %v2123
    %v2125 = vrot.slane %v2100, %v2124
    %v2127 = vadd.f32 %v2120, %v2125
    %2128 = vst.msk [vmem:[#allocation2] sm:$0x3] %vm1879, %v2127
    // Predicated region
    $region70: #{encoder_only_forward.1} parent=1 // pred_check
      _
    $region71: #{encoder_only_forward.1} parent=1 // pred_check_branch
      %2130 = sbr.rel (0) target = $region73
    $region72: #{encoder_only_forward.1} parent=1 // pred_region
      %s2132 = ssub.s32 32, 32
      %2133 = vsyncadd [#allocation3], %s2132
      %s2135 = sshll.u32 [#allocation2], 4
      %s2136 = int_to_ptr.vmem [resolvable:$true] %s2135
      %2138 = dma.vmem_to_hbm [thread:$0]  %s2136, 32, %s17, [#allocation3]
    $region73: #{encoder_only_forward.1} parent=1 // pred_fallthru
      _
    // Predicated region
    $region74: #{encoder_only_forward.1} parent=1 // pred_check
      _
    $region75: #{encoder_only_forward.1} parent=1 // pred_check_branch
      %2140 = sbr.rel (0) target = $region77
    $region76: #{encoder_only_forward.1} parent=1 // pred_region
      %2141 = dma.done [#allocation3], 32
    $region77: #{encoder_only_forward.1} parent=1 // pred_fallthru
      _
    %2142 = vsyncpa [#allocation3], 1

</llo_original>
